<compile_context>
chip_gen: v7x
topology: tpu7x:2x2x1
jax: 0.10.0
libtpu: 0.0.40
codegen_flags: <defaults>
</compile_context>

<pallas_src>
import jax
import jax.numpy as jnp
import numpy as np
from jax.experimental import pallas as pl
from jax.experimental.pallas import tpu as pltpu

LAYER_SIZE = {"in": 4, "out": 4, "io": 32, "cf": 32, "cs": 32}
TAU = {"tau_io": 2.0, "tau_cf": 5.0, "tau_cs": 70.0}
PACK = 128  # packed lane width for the recurrent state (one vreg lane tile)

_LAYERS = [
    ("i2io", "in", "io"),
    ("io2io", "io", "io"),
    ("cf2io", "cf", "io"),
    ("io2cf", "io", "cf"),
    ("cf2cf", "cf", "cf"),
    ("cs2cf", "cs", "cf"),
    ("cf2cs", "cf", "cs"),
    ("cs2cs", "cs", "cs"),
    ("io2o", "io", "out"),
]


def _mtrnn_chunk_kernel(x_ref, init_ref, w1_ref, wx_ref, b1_ref, w2_ref, b2_ref,
                        decay_ref, invtau_ref,
                        y_ref, state_ref):
    """One grid step = TC recurrent timesteps for one batch tile.

    state_ref is the resident packed state [io | cf | cs | 0-pad] (TB, 128);
    it is revisited across the trailing ("arbitrary") time-chunk axis and
    doubles as the final-state output.
    """
    c = pl.program_id(1)  # time-chunk index (trailing, sequential axis)

    @pl.when(c == 0)
    def _():
        state_ref[...] = init_ref[...]

    tb = state_ref.shape[0]
    out = b2_ref.shape[1]
    tc = x_ref.shape[0]

    # Hoist all constant reads / broadcasts out of the unrolled time loop
    # (JAX does not CSE broadcast_in_dim).
    w1 = w1_ref[...]
    wx = wx_ref[...]
    w2 = w2_ref[...]
    b1 = jnp.broadcast_to(b1_ref[...], (tb, PACK))
    b2 = jnp.broadcast_to(b2_ref[...], (tb, out))
    decay = jnp.broadcast_to(decay_ref[...], (tb, PACK))
    invt = jnp.broadcast_to(invtau_ref[...], (tb, PACK))

    state = state_ref[...]  # (TB, 128)

    # Small static trip count -> fully unrolled straight-line code.
    for t in range(tc):
        x_t = x_ref[t]  # (TB, IN), un-padded
        # All recurrent linears fused into one MXU matmul; the input linear
        # (i2io) is a tiny separate matmul so x never needs lane padding.
        gate = (jnp.dot(state, w1, preferred_element_type=jnp.float32)
                + jnp.dot(x_t, wx, preferred_element_type=jnp.float32)
                + b1)
        # Leaky integration + tanh.  decay/inv_tau are 0 on pad lanes, so the
        # pad lanes of the state stay exactly 0.
        state = jnp.tanh(decay * state + invt * gate)
        # Output head: only the io lanes of W2 are nonzero.
        y_ref[t] = jnp.tanh(
            jnp.dot(state, w2, preferred_element_type=jnp.float32) + b2)

    state_ref[...] = state


def _pack_params(params, tau):
    """Pack the 9 nn.Linear layers + tau constants into lane-dense buffers."""
    ls = LAYER_SIZE
    IO, CF, CS, IN, OUT = ls["io"], ls["cf"], ls["cs"], ls["in"], ls["out"]
    off_io, off_cf, off_cs = 0, IO, IO + CF

    w1 = np.zeros((PACK, PACK), np.float32)   # recurrent state -> gates
    wx = np.zeros((IN, PACK), np.float32)     # input x -> io gate
    b1 = np.zeros((1, PACK), np.float32)
    w2 = np.zeros((PACK, OUT), np.float32)    # new io state -> output
    b2 = np.zeros((1, OUT), np.float32)
    decay = np.zeros((1, PACK), np.float32)
    invt = np.zeros((1, PACK), np.float32)

    def put(name, row_off, col_off):
        w, b = params[name]
        w = np.asarray(w, np.float32)          # (out, in) PyTorch layout
        b = np.asarray(b, np.float32)
        w1[row_off:row_off + w.shape[1], col_off:col_off + w.shape[0]] += w.T
        b1[0, col_off:col_off + w.shape[0]] += b

    # io gate columns
    put("io2io", off_io, off_io)
    put("cf2io", off_cf, off_io)
    # cf gate columns
    put("cf2cf", off_cf, off_cf)
    put("cs2cf", off_cs, off_cf)
    put("io2cf", off_io, off_cf)
    # cs gate columns
    put("cs2cs", off_cs, off_cs)
    put("cf2cs", off_cf, off_cs)

    # Input linear kept separate so x stays (B, IN) instead of lane-padded.
    w_i, b_i = params["i2io"]
    wx[:, off_io:off_io + IO] = np.asarray(w_i, np.float32).T
    b1[0, off_io:off_io + IO] += np.asarray(b_i, np.float32)

    # Output head.
    w_o, b_o = params["io2o"]
    w2[off_io:off_io + IO, :] = np.asarray(w_o, np.float32).T
    b2[0, :] = np.asarray(b_o, np.float32)

    decay[0, off_io:off_io + IO] = 1.0 - 1.0 / tau["tau_io"]
    decay[0, off_cf:off_cf + CF] = 1.0 - 1.0 / tau["tau_cf"]
    decay[0, off_cs:off_cs + CS] = 1.0 - 1.0 / tau["tau_cs"]
    invt[0, off_io:off_io + IO] = 1.0 / tau["tau_io"]
    invt[0, off_cf:off_cf + CF] = 1.0 / tau["tau_cf"]
    invt[0, off_cs:off_cs + CS] = 1.0 / tau["tau_cs"]

    return tuple(jnp.asarray(a) for a in (w1, wx, b1, w2, b2, decay, invt))


def mtrnn_forward_seq(x_seq, io0, cf0, cs0, params, tau=TAU,
                      time_chunk=32, batch_tile=None):
    """Run T MTRNN steps fused in one kernel.

    x_seq: (T, B, in) (or anything reshapeable to (T, -1, in)).
    Returns (y_seq (T, B, out), io_T, cf_T, cs_T) — identical to calling the
    PyTorch forward T times with carried state.
    """
    ls = LAYER_SIZE
    IN, OUT = ls["in"], ls["out"]
    IO, CF, CS = ls["io"], ls["cf"], ls["cs"]

    x_seq = jnp.asarray(x_seq, jnp.float32).reshape(x_seq.shape[0], -1, IN)
    T, B, _ = x_seq.shape

    io0 = jnp.asarray(io0, jnp.float32)
    cf0 = jnp.asarray(cf0, jnp.float32)
    cs0 = jnp.asarray(cs0, jnp.float32)

    # Pad batch up to a sublane multiple (8); padded rows are independent and
    # sliced off at the end.
    Bp = -(-B // 8) * 8
    if Bp != B:
        pad = Bp - B
        x_seq = jnp.pad(x_seq, ((0, 0), (0, pad), (0, 0)))
        io0 = jnp.pad(io0, ((0, pad), (0, 0)))
        cf0 = jnp.pad(cf0, ((0, pad), (0, 0)))
        cs0 = jnp.pad(cs0, ((0, pad), (0, 0)))

    # Time chunk: largest value <= time_chunk that divides T (keeps the carried
    # state exact without remainder masking).  Chunk VMEM cost is tiny here
    # (2 arrays x 2 buffers x TC*TB*(IN|OUT)*4 B), far under scoped limits.
    tc = max(1, min(time_chunk, T))
    while T % tc:
        tc -= 1

    # Batch tile: multiple of 8, divides Bp, <= 256 rows per MXU pass.  With
    # more than one tile the "parallel" axis lets v7x use both TensorCores.
    if batch_tile is None:
        tb = Bp if Bp <= 256 else next(
            t for t in (256, 128, 64, 32, 16, 8) if Bp % t == 0)
    else:
        tb = int(batch_tile)
        if Bp % tb != 0 or tb % 8 != 0:
            raise ValueError(f"batch_tile={tb} must be a multiple of 8 dividing {Bp}")

    # Packed initial state [io | cf | cs | 0-pad].
    init_state = jnp.zeros((Bp, PACK), jnp.float32)
    init_state = init_state.at[:, 0:IO].set(io0)
    init_state = init_state.at[:, IO:IO + CF].set(cf0)
    init_state = init_state.at[:, IO + CF:IO + CF + CS].set(cs0)

    w1, wx, b1, w2, b2, decay, invt = _pack_params(params, tau)

    def const(shape):
        return pl.BlockSpec(shape, lambda b, c: (0, 0))

    grid = (Bp // tb, T // tc)

    y_p, state_out = pl.pallas_call(
        _mtrnn_chunk_kernel,
        out_shape=(
            jax.ShapeDtypeStruct((T, Bp, OUT), jnp.float32),   # y, un-padded lanes
            jax.ShapeDtypeStruct((Bp, PACK), jnp.float32),     # final packed state
        ),
        grid=grid,
        in_specs=[
            pl.BlockSpec((tc, tb, IN), lambda b, c: (c, b, 0)),  # x chunk (un-padded)
            pl.BlockSpec((tb, PACK), lambda b, c: (b, 0)),       # init state tile
            const((PACK, PACK)),   # packed recurrent weights W1
            const((IN, PACK)),     # input-linear weights Wx
            const((1, PACK)),      # packed gate biases
            const((PACK, OUT)),    # output-head weights
            const((1, OUT)),       # output-head bias
            const((1, PACK)),      # decay = 1 - 1/tau per lane group
            const((1, PACK)),      # inv_tau = 1/tau per lane group
        ],
        out_specs=(
            pl.BlockSpec((tc, tb, OUT), lambda b, c: (c, b, 0)),  # y chunk
            pl.BlockSpec((tb, PACK), lambda b, c: (b, 0)),        # resident state
        ),
        compiler_params=pltpu.CompilerParams(
            dimension_semantics=("parallel", "arbitrary")),
    )(x_seq, init_state, w1, wx, b1, w2, b2, decay, invt)

    if Bp != B:
        y_p = y_p[:, :B, :]
        state_out = state_out[:B]

    io_T = state_out[:, 0:IO]
    cf_T = state_out[:, IO:IO + CF]
    cs_T = state_out[:, IO + CF:IO + CF + CS]
    return y_p, io_T, cf_T, cs_T


def init_params(key):
    """Deterministic nn.Linear-style init: U(-1/sqrt(fan_in), 1/sqrt(fan_in))."""
    params = {}
    for name, in_key, out_key in _LAYERS:
        fan_in = LAYER_SIZE[in_key]
        fan_out = LAYER_SIZE[out_key]
        key, kw, kb = jax.random.split(key, 3)
        bound = 1.0 / np.sqrt(fan_in)
        w = jax.random.uniform(kw, (fan_out, fan_in), jnp.float32, -bound, bound)
        b = jax.random.uniform(kb, (fan_out,), jnp.float32, -bound, bound)
        params[name] = (w, b)
    return params


def ref_forward(x, io, cf, cs, params, tau=TAU):
    """Pure-JAX single-step reference of the PyTorch forward."""
    x = x.reshape(-1, LAYER_SIZE["in"])

    def lin(a, name):
        w, b = params[name]
        return a @ w.T + b

    new_io = jnp.tanh((1.0 - 1.0 / tau["tau_io"]) * io
                      + (lin(io, "io2io") + lin(cf, "cf2io") + lin(x, "i2io")) / tau["tau_io"])
    new_cf = jnp.tanh((1.0 - 1.0 / tau["tau_cf"]) * cf
                      + (lin(cf, "cf2cf") + lin(cs, "cs2cf") + lin(io, "io2cf")) / tau["tau_cf"])
    new_cs = jnp.tanh((1.0 - 1.0 / tau["tau_cs"]) * cs
                      + (lin(cs, "cs2cs") + lin(cf, "cf2cs")) / tau["tau_cs"])
    y = jnp.tanh(lin(new_io, "io2o"))
    return y, new_io, new_cf, new_cs


def _run_reference(x_seq, io, cf, cs, params):
    rio, rcf, rcs = io, cf, cs
    ys = []
    for t in range(x_seq.shape[0]):
        ry, rio, rcf, rcs = ref_forward(x_seq[t], rio, rcf, rcs, params)
        ys.append(ry)
    return jnp.stack(ys, axis=0), rio, rcf, rcs


if __name__ == "__main__":
    key = jax.random.PRNGKey(0)
    params = init_params(key)

    # --- Main test: multiple time chunks (grid axis 1 = 4) and multiple batch
    #     tiles (grid axis 0 = 2, exercising the "parallel" megacore axis).
    T, B = 32, 16
    key, kx = jax.random.split(key)
    x_seq = jax.random.normal(kx, (T, B, LAYER_SIZE["in"]), jnp.float32)
    io = jnp.zeros((B, LAYER_SIZE["io"]), jnp.float32)
    cf = jnp.zeros((B, LAYER_SIZE["cf"]), jnp.float32)
    cs = jnp.zeros((B, LAYER_SIZE["cs"]), jnp.float32)

    y_seq, io_T, cf_T, cs_T = mtrnn_forward_seq(
        x_seq, io, cf, cs, params, time_chunk=8, batch_tile=8)
    jax.block_until_ready((y_seq, io_T, cf_T, cs_T))

    ref_y, rio, rcf, rcs = _run_reference(x_seq, io, cf, cs, params)
    np.testing.assert_allclose(np.asarray(y_seq), np.asarray(ref_y), rtol=5e-5, atol=5e-5)
    np.testing.assert_allclose(np.asarray(io_T), np.asarray(rio), rtol=5e-5, atol=5e-5)
    np.testing.assert_allclose(np.asarray(cf_T), np.asarray(rcf), rtol=5e-5, atol=5e-5)
    np.testing.assert_allclose(np.asarray(cs_T), np.asarray(rcs), rtol=5e-5, atol=5e-5)

    # --- Ragged test: batch not a multiple of 8, T not a multiple of the
    #     requested chunk (exercises batch padding + chunk-size fallback).
    T2, B2 = 7, 5
    key, kx2 = jax.random.split(key)
    x2 = jax.random.normal(kx2, (T2, B2, LAYER_SIZE["in"]), jnp.float32)
    io2 = jnp.zeros((B2, LAYER_SIZE["io"]), jnp.float32)
    cf2 = jnp.zeros((B2, LAYER_SIZE["cf"]), jnp.float32)
    cs2 = jnp.zeros((B2, LAYER_SIZE["cs"]), jnp.float32)

    y2, io2_T, cf2_T, cs2_T = mtrnn_forward_seq(x2, io2, cf2, cs2, params, time_chunk=8)
    jax.block_until_ready((y2, io2_T, cf2_T, cs2_T))

    ref_y2, rio2, rcf2, rcs2 = _run_reference(x2, io2, cf2, cs2, params)
    np.testing.assert_allclose(np.asarray(y2), np.asarray(ref_y2), rtol=5e-5, atol=5e-5)
    np.testing.assert_allclose(np.asarray(io2_T), np.asarray(rio2), rtol=5e-5, atol=5e-5)
    np.testing.assert_allclose(np.asarray(cf2_T), np.asarray(rcf2), rtol=5e-5, atol=5e-5)
    np.testing.assert_allclose(np.asarray(cs2_T), np.asarray(rcs2), rtol=5e-5, atol=5e-5)

    print("KERNEL_OK")
</pallas_src>

<mosaic_0001>
module attributes {stable_mosaic.version = 11 : i64} {
  func.func @_mtrnn_chunk_kernel(%arg0: i32, %arg1: i32, %arg2: memref<8x8x4xf32, #tpu.memory_space<vmem>>, %arg3: memref<8x128xf32, #tpu.memory_space<vmem>>, %arg4: memref<128x128xf32, #tpu.memory_space<vmem>>, %arg5: memref<4x128xf32, #tpu.memory_space<vmem>>, %arg6: memref<1x128xf32, #tpu.memory_space<vmem>>, %arg7: memref<128x4xf32, #tpu.memory_space<vmem>>, %arg8: memref<1x4xf32, #tpu.memory_space<vmem>>, %arg9: memref<1x128xf32, #tpu.memory_space<vmem>>, %arg10: memref<1x128xf32, #tpu.memory_space<vmem>>, %arg11: memref<8x8x4xf32, #tpu.memory_space<vmem>>, %arg12: memref<8x128xf32, #tpu.memory_space<vmem>>) attributes {dimension_semantics = [#tpu.dimension_semantics<parallel>, #tpu.dimension_semantics<arbitrary>], iteration_bounds = array<i64: 2, 4>, scalar_prefetch = 0 : i64, scratch_operands = 0 : i64, tpu.core_type = #tpu.core_type<tc>, window_params = [{transform_indices = @transform_0, window_bounds = array<i64: 8, 8, 4>}, {transform_indices = @transform_1, window_bounds = array<i64: 8, 128>}, {pipeline_mode = #tpu.pipeline_mode<synchronous>, transform_indices = @transform_2, window_bounds = array<i64: 128, 128>}, {pipeline_mode = #tpu.pipeline_mode<synchronous>, transform_indices = @transform_3, window_bounds = array<i64: 4, 128>}, {pipeline_mode = #tpu.pipeline_mode<synchronous>, transform_indices = @transform_4, window_bounds = array<i64: 1, 128>}, {pipeline_mode = #tpu.pipeline_mode<synchronous>, transform_indices = @transform_5, window_bounds = array<i64: 128, 4>}, {pipeline_mode = #tpu.pipeline_mode<synchronous>, transform_indices = @transform_6, window_bounds = array<i64: 1, 4>}, {pipeline_mode = #tpu.pipeline_mode<synchronous>, transform_indices = @transform_7, window_bounds = array<i64: 1, 128>}, {pipeline_mode = #tpu.pipeline_mode<synchronous>, transform_indices = @transform_8, window_bounds = array<i64: 1, 128>}, {transform_indices = @transform_9, window_bounds = array<i64: 8, 8, 4>}, {transform_indices = @transform_10, window_bounds = array<i64: 8, 128>}]} {
    %c0_i32 = arith.constant 0 : i32
    %0 = arith.cmpi eq, %arg1, %c0_i32 : i32
    %1 = arith.extui %0 : i1 to i32
    %c0_i32_0 = arith.constant 0 : i32
    %2 = arith.cmpi ne, %1, %c0_i32_0 : i32
    scf.if %2 {
      %c0_82 = arith.constant 0 : index
      %c0_83 = arith.constant 0 : index
      %148 = vector.load %arg3[%c0_82, %c0_83] : memref<8x128xf32, #tpu.memory_space<vmem>>, vector<8x128xf32>
      %c0_84 = arith.constant 0 : index
      %c0_85 = arith.constant 0 : index
      %149 = vector.load %arg12[%c0_84, %c0_85] : memref<8x128xf32, #tpu.memory_space<vmem>>, vector<8x128xf32>
      tpu.vector_store %arg12[%c0_84, %c0_85], %148 {strides = array<i32>} : memref<8x128xf32, #tpu.memory_space<vmem>>, vector<8x128xf32>,
    } else {
    }
    %c0 = arith.constant 0 : index
    %c0_1 = arith.constant 0 : index
    %3 = vector.load %arg4[%c0, %c0_1] : memref<128x128xf32, #tpu.memory_space<vmem>>, vector<128x128xf32>
    %c0_2 = arith.constant 0 : index
    %c0_3 = arith.constant 0 : index
    %4 = vector.load %arg5[%c0_2, %c0_3] : memref<4x128xf32, #tpu.memory_space<vmem>>, vector<4x128xf32>
    %c0_4 = arith.constant 0 : index
    %c0_5 = arith.constant 0 : index
    %5 = vector.load %arg7[%c0_4, %c0_5] : memref<128x4xf32, #tpu.memory_space<vmem>>, vector<128x4xf32>
    %c0_6 = arith.constant 0 : index
    %c0_7 = arith.constant 0 : index
    %6 = vector.load %arg6[%c0_6, %c0_7] : memref<1x128xf32, #tpu.memory_space<vmem>>, vector<1x128xf32>
    %7 = vector.shape_cast %6 : vector<1x128xf32> to vector<1x128xf32>
    %8 = vector.broadcast %7 : vector<1x128xf32> to vector<8x128xf32>
    %c0_8 = arith.constant 0 : index
    %c0_9 = arith.constant 0 : index
    %9 = vector.load %arg8[%c0_8, %c0_9] : memref<1x4xf32, #tpu.memory_space<vmem>>, vector<1x4xf32>
    %10 = vector.shape_cast %9 : vector<1x4xf32> to vector<1x4xf32>
    %11 = vector.broadcast %10 : vector<1x4xf32> to vector<8x4xf32>
    %c0_10 = arith.constant 0 : index
    %c0_11 = arith.constant 0 : index
    %12 = vector.load %arg9[%c0_10, %c0_11] : memref<1x128xf32, #tpu.memory_space<vmem>>, vector<1x128xf32>
    %13 = vector.shape_cast %12 : vector<1x128xf32> to vector<1x128xf32>
    %14 = vector.broadcast %13 : vector<1x128xf32> to vector<8x128xf32>
    %c0_12 = arith.constant 0 : index
    %c0_13 = arith.constant 0 : index
    %15 = vector.load %arg10[%c0_12, %c0_13] : memref<1x128xf32, #tpu.memory_space<vmem>>, vector<1x128xf32>
    %16 = vector.shape_cast %15 : vector<1x128xf32> to vector<1x128xf32>
    %17 = vector.broadcast %16 : vector<1x128xf32> to vector<8x128xf32>
    %c0_14 = arith.constant 0 : index
    %c0_15 = arith.constant 0 : index
    %18 = vector.load %arg12[%c0_14, %c0_15] : memref<8x128xf32, #tpu.memory_space<vmem>>, vector<8x128xf32>
    %c0_16 = arith.constant 0 : index
    %c0_17 = arith.constant 0 : index
    %c0_18 = arith.constant 0 : index
    %19 = vector.load %arg2[%c0_16, %c0_17, %c0_18] : memref<8x8x4xf32, #tpu.memory_space<vmem>>, vector<1x8x4xf32>
    %20 = vector.shape_cast %19 : vector<1x8x4xf32> to vector<8x4xf32>
    %cst = arith.constant dense<0.000000e+00> : vector<8x128xf32>
    %21 = tpu.matmul %18, %3, %cst {dimension_numbers = #tpu.dot_dimension_numbers<[1], [0], [0], [1], [0, 0, 1, 1], [], []>} : vector<8x128xf32>, vector<128x128xf32>, vector<8x128xf32> -> vector<8x128xf32>
    %cst_19 = arith.constant dense<0.000000e+00> : vector<8x128xf32>
    %22 = tpu.matmul %20, %4, %cst_19 {dimension_numbers = #tpu.dot_dimension_numbers<[1], [0], [0], [1], [0, 0, 1, 1], [], []>} : vector<8x4xf32>, vector<4x128xf32>, vector<8x128xf32> -> vector<8x128xf32>
    %23 = arith.addf %21, %22 : vector<8x128xf32>
    %24 = arith.addf %23, %8 : vector<8x128xf32>
    %25 = arith.mulf %14, %18 : vector<8x128xf32>
    %26 = arith.mulf %17, %24 : vector<8x128xf32>
    %27 = arith.addf %25, %26 : vector<8x128xf32>
    %28 = math.tanh %27 : vector<8x128xf32>
    %cst_20 = arith.constant dense<0.000000e+00> : vector<8x4xf32>
    %29 = tpu.matmul %28, %5, %cst_20 {dimension_numbers = #tpu.dot_dimension_numbers<[1], [0], [0], [1], [0, 0, 1, 1], [], []>} : vector<8x128xf32>, vector<128x4xf32>, vector<8x4xf32> -> vector<8x4xf32>
    %30 = arith.addf %29, %11 : vector<8x4xf32>
    %31 = math.tanh %30 : vector<8x4xf32>
    %c0_21 = arith.constant 0 : index
    %c0_22 = arith.constant 0 : index
    %c0_23 = arith.constant 0 : index
    %32 = vector.load %arg11[%c0_21, %c0_22, %c0_23] : memref<8x8x4xf32, #tpu.memory_space<vmem>>, vector<1x8x4xf32>
    %33 = vector.shape_cast %32 : vector<1x8x4xf32> to vector<8x4xf32>
    %34 = vector.shape_cast %31 : vector<8x4xf32> to vector<1x8x4xf32>
    tpu.vector_store %arg11[%c0_21, %c0_22, %c0_23], %34 {strides = array<i32>} : memref<8x8x4xf32, #tpu.memory_space<vmem>>, vector<1x8x4xf32>,
    %c1 = arith.constant 1 : index
    %c0_24 = arith.constant 0 : index
    %c0_25 = arith.constant 0 : index
    %35 = vector.load %arg2[%c1, %c0_24, %c0_25] : memref<8x8x4xf32, #tpu.memory_space<vmem>>, vector<1x8x4xf32>
    %36 = vector.shape_cast %35 : vector<1x8x4xf32> to vector<8x4xf32>
    %cst_26 = arith.constant dense<0.000000e+00> : vector<8x128xf32>
    %37 = tpu.matmul %28, %3, %cst_26 {dimension_numbers = #tpu.dot_dimension_numbers<[1], [0], [0], [1], [0, 0, 1, 1], [], []>} : vector<8x128xf32>, vector<128x128xf32>, vector<8x128xf32> -> vector<8x128xf32>
    %cst_27 = arith.constant dense<0.000000e+00> : vector<8x128xf32>
    %38 = tpu.matmul %36, %4, %cst_27 {dimension_numbers = #tpu.dot_dimension_numbers<[1], [0], [0], [1], [0, 0, 1, 1], [], []>} : vector<8x4xf32>, vector<4x128xf32>, vector<8x128xf32> -> vector<8x128xf32>
    %39 = arith.addf %37, %38 : vector<8x128xf32>
    %40 = arith.addf %39, %8 : vector<8x128xf32>
    %41 = arith.mulf %14, %28 : vector<8x128xf32>
    %42 = arith.mulf %17, %40 : vector<8x128xf32>
    %43 = arith.addf %41, %42 : vector<8x128xf32>
    %44 = math.tanh %43 : vector<8x128xf32>
    %cst_28 = arith.constant dense<0.000000e+00> : vector<8x4xf32>
    %45 = tpu.matmul %44, %5, %cst_28 {dimension_numbers = #tpu.dot_dimension_numbers<[1], [0], [0], [1], [0, 0, 1, 1], [], []>} : vector<8x128xf32>, vector<128x4xf32>, vector<8x4xf32> -> vector<8x4xf32>
    %46 = arith.addf %45, %11 : vector<8x4xf32>
    %47 = math.tanh %46 : vector<8x4xf32>
    %c1_29 = arith.constant 1 : index
    %c0_30 = arith.constant 0 : index
    %c0_31 = arith.constant 0 : index
    %48 = vector.load %arg11[%c1_29, %c0_30, %c0_31] : memref<8x8x4xf32, #tpu.memory_space<vmem>>, vector<1x8x4xf32>
    %49 = vector.shape_cast %48 : vector<1x8x4xf32> to vector<8x4xf32>
    %50 = vector.shape_cast %47 : vector<8x4xf32> to vector<1x8x4xf32>
    tpu.vector_store %arg11[%c1_29, %c0_30, %c0_31], %50 {strides = array<i32>} : memref<8x8x4xf32, #tpu.memory_space<vmem>>, vector<1x8x4xf32>,
    %c2 = arith.constant 2 : index
    %c0_32 = arith.constant 0 : index
    %c0_33 = arith.constant 0 : index
    %51 = vector.load %arg2[%c2, %c0_32, %c0_33] : memref<8x8x4xf32, #tpu.memory_space<vmem>>, vector<1x8x4xf32>
    %52 = vector.shape_cast %51 : vector<1x8x4xf32> to vector<8x4xf32>
    %cst_34 = arith.constant dense<0.000000e+00> : vector<8x128xf32>
    %53 = tpu.matmul %44, %3, %cst_34 {dimension_numbers = #tpu.dot_dimension_numbers<[1], [0], [0], [1], [0, 0, 1, 1], [], []>} : vector<8x128xf32>, vector<128x128xf32>, vector<8x128xf32> -> vector<8x128xf32>
    %cst_35 = arith.constant dense<0.000000e+00> : vector<8x128xf32>
    %54 = tpu.matmul %52, %4, %cst_35 {dimension_numbers = #tpu.dot_dimension_numbers<[1], [0], [0], [1], [0, 0, 1, 1], [], []>} : vector<8x4xf32>, vector<4x128xf32>, vector<8x128xf32> -> vector<8x128xf32>
    %55 = arith.addf %53, %54 : vector<8x128xf32>
    %56 = arith.addf %55, %8 : vector<8x128xf32>
    %57 = arith.mulf %14, %44 : vector<8x128xf32>
    %58 = arith.mulf %17, %56 : vector<8x128xf32>
    %59 = arith.addf %57, %58 : vector<8x128xf32>
    %60 = math.tanh %59 : vector<8x128xf32>
    %cst_36 = arith.constant dense<0.000000e+00> : vector<8x4xf32>
    %61 = tpu.matmul %60, %5, %cst_36 {dimension_numbers = #tpu.dot_dimension_numbers<[1], [0], [0], [1], [0, 0, 1, 1], [], []>} : vector<8x128xf32>, vector<128x4xf32>, vector<8x4xf32> -> vector<8x4xf32>
    %62 = arith.addf %61, %11 : vector<8x4xf32>
    %63 = math.tanh %62 : vector<8x4xf32>
    %c2_37 = arith.constant 2 : index
    %c0_38 = arith.constant 0 : index
    %c0_39 = arith.constant 0 : index
    %64 = vector.load %arg11[%c2_37, %c0_38, %c0_39] : memref<8x8x4xf32, #tpu.memory_space<vmem>>, vector<1x8x4xf32>
    %65 = vector.shape_cast %64 : vector<1x8x4xf32> to vector<8x4xf32>
    %66 = vector.shape_cast %63 : vector<8x4xf32> to vector<1x8x4xf32>
    tpu.vector_store %arg11[%c2_37, %c0_38, %c0_39], %66 {strides = array<i32>} : memref<8x8x4xf32, #tpu.memory_space<vmem>>, vector<1x8x4xf32>,
    %c3 = arith.constant 3 : index
    %c0_40 = arith.constant 0 : index
    %c0_41 = arith.constant 0 : index
    %67 = vector.load %arg2[%c3, %c0_40, %c0_41] : memref<8x8x4xf32, #tpu.memory_space<vmem>>, vector<1x8x4xf32>
    %68 = vector.shape_cast %67 : vector<1x8x4xf32> to vector<8x4xf32>
    %cst_42 = arith.constant dense<0.000000e+00> : vector<8x128xf32>
    %69 = tpu.matmul %60, %3, %cst_42 {dimension_numbers = #tpu.dot_dimension_numbers<[1], [0], [0], [1], [0, 0, 1, 1], [], []>} : vector<8x128xf32>, vector<128x128xf32>, vector<8x128xf32> -> vector<8x128xf32>
    %cst_43 = arith.constant dense<0.000000e+00> : vector<8x128xf32>
    %70 = tpu.matmul %68, %4, %cst_43 {dimension_numbers = #tpu.dot_dimension_numbers<[1], [0], [0], [1], [0, 0, 1, 1], [], []>} : vector<8x4xf32>, vector<4x128xf32>, vector<8x128xf32> -> vector<8x128xf32>
    %71 = arith.addf %69, %70 : vector<8x128xf32>
    %72 = arith.addf %71, %8 : vector<8x128xf32>
    %73 = arith.mulf %14, %60 : vector<8x128xf32>
    %74 = arith.mulf %17, %72 : vector<8x128xf32>
    %75 = arith.addf %73, %74 : vector<8x128xf32>
    %76 = math.tanh %75 : vector<8x128xf32>
    %cst_44 = arith.constant dense<0.000000e+00> : vector<8x4xf32>
    %77 = tpu.matmul %76, %5, %cst_44 {dimension_numbers = #tpu.dot_dimension_numbers<[1], [0], [0], [1], [0, 0, 1, 1], [], []>} : vector<8x128xf32>, vector<128x4xf32>, vector<8x4xf32> -> vector<8x4xf32>
    %78 = arith.addf %77, %11 : vector<8x4xf32>
    %79 = math.tanh %78 : vector<8x4xf32>
    %c3_45 = arith.constant 3 : index
    %c0_46 = arith.constant 0 : index
    %c0_47 = arith.constant 0 : index
    %80 = vector.load %arg11[%c3_45, %c0_46, %c0_47] : memref<8x8x4xf32, #tpu.memory_space<vmem>>, vector<1x8x4xf32>
    %81 = vector.shape_cast %80 : vector<1x8x4xf32> to vector<8x4xf32>
    %82 = vector.shape_cast %79 : vector<8x4xf32> to vector<1x8x4xf32>
    tpu.vector_store %arg11[%c3_45, %c0_46, %c0_47], %82 {strides = array<i32>} : memref<8x8x4xf32, #tpu.memory_space<vmem>>, vector<1x8x4xf32>,
    %c4 = arith.constant 4 : index
    %c0_48 = arith.constant 0 : index
    %c0_49 = arith.constant 0 : index
    %83 = vector.load %arg2[%c4, %c0_48, %c0_49] : memref<8x8x4xf32, #tpu.memory_space<vmem>>, vector<1x8x4xf32>
    %84 = vector.shape_cast %83 : vector<1x8x4xf32> to vector<8x4xf32>
    %cst_50 = arith.constant dense<0.000000e+00> : vector<8x128xf32>
    %85 = tpu.matmul %76, %3, %cst_50 {dimension_numbers = #tpu.dot_dimension_numbers<[1], [0], [0], [1], [0, 0, 1, 1], [], []>} : vector<8x128xf32>, vector<128x128xf32>, vector<8x128xf32> -> vector<8x128xf32>
    %cst_51 = arith.constant dense<0.000000e+00> : vector<8x128xf32>
    %86 = tpu.matmul %84, %4, %cst_51 {dimension_numbers = #tpu.dot_dimension_numbers<[1], [0], [0], [1], [0, 0, 1, 1], [], []>} : vector<8x4xf32>, vector<4x128xf32>, vector<8x128xf32> -> vector<8x128xf32>
    %87 = arith.addf %85, %86 : vector<8x128xf32>
    %88 = arith.addf %87, %8 : vector<8x128xf32>
    %89 = arith.mulf %14, %76 : vector<8x128xf32>
    %90 = arith.mulf %17, %88 : vector<8x128xf32>
    %91 = arith.addf %89, %90 : vector<8x128xf32>
    %92 = math.tanh %91 : vector<8x128xf32>
    %cst_52 = arith.constant dense<0.000000e+00> : vector<8x4xf32>
    %93 = tpu.matmul %92, %5, %cst_52 {dimension_numbers = #tpu.dot_dimension_numbers<[1], [0], [0], [1], [0, 0, 1, 1], [], []>} : vector<8x128xf32>, vector<128x4xf32>, vector<8x4xf32> -> vector<8x4xf32>
    %94 = arith.addf %93, %11 : vector<8x4xf32>
    %95 = math.tanh %94 : vector<8x4xf32>
    %c4_53 = arith.constant 4 : index
    %c0_54 = arith.constant 0 : index
    %c0_55 = arith.constant 0 : index
    %96 = vector.load %arg11[%c4_53, %c0_54, %c0_55] : memref<8x8x4xf32, #tpu.memory_space<vmem>>, vector<1x8x4xf32>
    %97 = vector.shape_cast %96 : vector<1x8x4xf32> to vector<8x4xf32>
    %98 = vector.shape_cast %95 : vector<8x4xf32> to vector<1x8x4xf32>
    tpu.vector_store %arg11[%c4_53, %c0_54, %c0_55], %98 {strides = array<i32>} : memref<8x8x4xf32, #tpu.memory_space<vmem>>, vector<1x8x4xf32>,
    %c5 = arith.constant 5 : index
    %c0_56 = arith.constant 0 : index
    %c0_57 = arith.constant 0 : index
    %99 = vector.load %arg2[%c5, %c0_56, %c0_57] : memref<8x8x4xf32, #tpu.memory_space<vmem>>, vector<1x8x4xf32>
    %100 = vector.shape_cast %99 : vector<1x8x4xf32> to vector<8x4xf32>
    %cst_58 = arith.constant dense<0.000000e+00> : vector<8x128xf32>
    %101 = tpu.matmul %92, %3, %cst_58 {dimension_numbers = #tpu.dot_dimension_numbers<[1], [0], [0], [1], [0, 0, 1, 1], [], []>} : vector<8x128xf32>, vector<128x128xf32>, vector<8x128xf32> -> vector<8x128xf32>
    %cst_59 = arith.constant dense<0.000000e+00> : vector<8x128xf32>
    %102 = tpu.matmul %100, %4, %cst_59 {dimension_numbers = #tpu.dot_dimension_numbers<[1], [0], [0], [1], [0, 0, 1, 1], [], []>} : vector<8x4xf32>, vector<4x128xf32>, vector<8x128xf32> -> vector<8x128xf32>
    %103 = arith.addf %101, %102 : vector<8x128xf32>
    %104 = arith.addf %103, %8 : vector<8x128xf32>
    %105 = arith.mulf %14, %92 : vector<8x128xf32>
    %106 = arith.mulf %17, %104 : vector<8x128xf32>
    %107 = arith.addf %105, %106 : vector<8x128xf32>
    %108 = math.tanh %107 : vector<8x128xf32>
    %cst_60 = arith.constant dense<0.000000e+00> : vector<8x4xf32>
    %109 = tpu.matmul %108, %5, %cst_60 {dimension_numbers = #tpu.dot_dimension_numbers<[1], [0], [0], [1], [0, 0, 1, 1], [], []>} : vector<8x128xf32>, vector<128x4xf32>, vector<8x4xf32> -> vector<8x4xf32>
    %110 = arith.addf %109, %11 : vector<8x4xf32>
    %111 = math.tanh %110 : vector<8x4xf32>
    %c5_61 = arith.constant 5 : index
    %c0_62 = arith.constant 0 : index
    %c0_63 = arith.constant 0 : index
    %112 = vector.load %arg11[%c5_61, %c0_62, %c0_63] : memref<8x8x4xf32, #tpu.memory_space<vmem>>, vector<1x8x4xf32>
    %113 = vector.shape_cast %112 : vector<1x8x4xf32> to vector<8x4xf32>
    %114 = vector.shape_cast %111 : vector<8x4xf32> to vector<1x8x4xf32>
    tpu.vector_store %arg11[%c5_61, %c0_62, %c0_63], %114 {strides = array<i32>} : memref<8x8x4xf32, #tpu.memory_space<vmem>>, vector<1x8x4xf32>,
    %c6 = arith.constant 6 : index
    %c0_64 = arith.constant 0 : index
    %c0_65 = arith.constant 0 : index
    %115 = vector.load %arg2[%c6, %c0_64, %c0_65] : memref<8x8x4xf32, #tpu.memory_space<vmem>>, vector<1x8x4xf32>
    %116 = vector.shape_cast %115 : vector<1x8x4xf32> to vector<8x4xf32>
    %cst_66 = arith.constant dense<0.000000e+00> : vector<8x128xf32>
    %117 = tpu.matmul %108, %3, %cst_66 {dimension_numbers = #tpu.dot_dimension_numbers<[1], [0], [0], [1], [0, 0, 1, 1], [], []>} : vector<8x128xf32>, vector<128x128xf32>, vector<8x128xf32> -> vector<8x128xf32>
    %cst_67 = arith.constant dense<0.000000e+00> : vector<8x128xf32>
    %118 = tpu.matmul %116, %4, %cst_67 {dimension_numbers = #tpu.dot_dimension_numbers<[1], [0], [0], [1], [0, 0, 1, 1], [], []>} : vector<8x4xf32>, vector<4x128xf32>, vector<8x128xf32> -> vector<8x128xf32>
    %119 = arith.addf %117, %118 : vector<8x128xf32>
    %120 = arith.addf %119, %8 : vector<8x128xf32>
    %121 = arith.mulf %14, %108 : vector<8x128xf32>
    %122 = arith.mulf %17, %120 : vector<8x128xf32>
    %123 = arith.addf %121, %122 : vector<8x128xf32>
    %124 = math.tanh %123 : vector<8x128xf32>
    %cst_68 = arith.constant dense<0.000000e+00> : vector<8x4xf32>
    %125 = tpu.matmul %124, %5, %cst_68 {dimension_numbers = #tpu.dot_dimension_numbers<[1], [0], [0], [1], [0, 0, 1, 1], [], []>} : vector<8x128xf32>, vector<128x4xf32>, vector<8x4xf32> -> vector<8x4xf32>
    %126 = arith.addf %125, %11 : vector<8x4xf32>
    %127 = math.tanh %126 : vector<8x4xf32>
    %c6_69 = arith.constant 6 : index
    %c0_70 = arith.constant 0 : index
    %c0_71 = arith.constant 0 : index
    %128 = vector.load %arg11[%c6_69, %c0_70, %c0_71] : memref<8x8x4xf32, #tpu.memory_space<vmem>>, vector<1x8x4xf32>
    %129 = vector.shape_cast %128 : vector<1x8x4xf32> to vector<8x4xf32>
    %130 = vector.shape_cast %127 : vector<8x4xf32> to vector<1x8x4xf32>
    tpu.vector_store %arg11[%c6_69, %c0_70, %c0_71], %130 {strides = array<i32>} : memref<8x8x4xf32, #tpu.memory_space<vmem>>, vector<1x8x4xf32>,
    %c7 = arith.constant 7 : index
    %c0_72 = arith.constant 0 : index
    %c0_73 = arith.constant 0 : index
    %131 = vector.load %arg2[%c7, %c0_72, %c0_73] : memref<8x8x4xf32, #tpu.memory_space<vmem>>, vector<1x8x4xf32>
    %132 = vector.shape_cast %131 : vector<1x8x4xf32> to vector<8x4xf32>
    %cst_74 = arith.constant dense<0.000000e+00> : vector<8x128xf32>
    %133 = tpu.matmul %124, %3, %cst_74 {dimension_numbers = #tpu.dot_dimension_numbers<[1], [0], [0], [1], [0, 0, 1, 1], [], []>} : vector<8x128xf32>, vector<128x128xf32>, vector<8x128xf32> -> vector<8x128xf32>
    %cst_75 = arith.constant dense<0.000000e+00> : vector<8x128xf32>
    %134 = tpu.matmul %132, %4, %cst_75 {dimension_numbers = #tpu.dot_dimension_numbers<[1], [0], [0], [1], [0, 0, 1, 1], [], []>} : vector<8x4xf32>, vector<4x128xf32>, vector<8x128xf32> -> vector<8x128xf32>
    %135 = arith.addf %133, %134 : vector<8x128xf32>
    %136 = arith.addf %135, %8 : vector<8x128xf32>
    %137 = arith.mulf %14, %124 : vector<8x128xf32>
    %138 = arith.mulf %17, %136 : vector<8x128xf32>
    %139 = arith.addf %137, %138 : vector<8x128xf32>
    %140 = math.tanh %139 : vector<8x128xf32>
    %cst_76 = arith.constant dense<0.000000e+00> : vector<8x4xf32>
    %141 = tpu.matmul %140, %5, %cst_76 {dimension_numbers = #tpu.dot_dimension_numbers<[1], [0], [0], [1], [0, 0, 1, 1], [], []>} : vector<8x128xf32>, vector<128x4xf32>, vector<8x4xf32> -> vector<8x4xf32>
    %142 = arith.addf %141, %11 : vector<8x4xf32>
    %143 = math.tanh %142 : vector<8x4xf32>
    %c7_77 = arith.constant 7 : index
    %c0_78 = arith.constant 0 : index
    %c0_79 = arith.constant 0 : index
    %144 = vector.load %arg11[%c7_77, %c0_78, %c0_79] : memref<8x8x4xf32, #tpu.memory_space<vmem>>, vector<1x8x4xf32>
    %145 = vector.shape_cast %144 : vector<1x8x4xf32> to vector<8x4xf32>
    %146 = vector.shape_cast %143 : vector<8x4xf32> to vector<1x8x4xf32>
    tpu.vector_store %arg11[%c7_77, %c0_78, %c0_79], %146 {strides = array<i32>} : memref<8x8x4xf32, #tpu.memory_space<vmem>>, vector<1x8x4xf32>,
    %c0_80 = arith.constant 0 : index
    %c0_81 = arith.constant 0 : index
    %147 = vector.load %arg12[%c0_80, %c0_81] : memref<8x128xf32, #tpu.memory_space<vmem>>, vector<8x128xf32>
    tpu.vector_store %arg12[%c0_80, %c0_81], %140 {strides = array<i32>} : memref<8x128xf32, #tpu.memory_space<vmem>>, vector<8x128xf32>,
    return
  }
  func.func @transform_0(%arg0: i32, %arg1: i32) -> (i32, i32, i32) {
    %c0_i32 = arith.constant 0 : i32
    %c0_i32_0 = arith.constant 0 : i32
    return %arg1, %arg0, %c0_i32 : i32, i32, i32
  }
  func.func @transform_1(%arg0: i32, %arg1: i32) -> (i32, i32) {
    %c0_i32 = arith.constant 0 : i32
    %c0_i32_0 = arith.constant 0 : i32
    return %arg0, %c0_i32 : i32, i32
  }
  func.func @transform_2(%arg0: i32, %arg1: i32) -> (i32, i32) {
    %c0_i32 = arith.constant 0 : i32
    %c0_i32_0 = arith.constant 0 : i32
    %c0_i32_1 = arith.constant 0 : i32
    return %c0_i32, %c0_i32_0 : i32, i32
  }
  func.func @transform_3(%arg0: i32, %arg1: i32) -> (i32, i32) {
    %c0_i32 = arith.constant 0 : i32
    %c0_i32_0 = arith.constant 0 : i32
    %c0_i32_1 = arith.constant 0 : i32
    return %c0_i32, %c0_i32_0 : i32, i32
  }
  func.func @transform_4(%arg0: i32, %arg1: i32) -> (i32, i32) {
    %c0_i32 = arith.constant 0 : i32
    %c0_i32_0 = arith.constant 0 : i32
    %c0_i32_1 = arith.constant 0 : i32
    return %c0_i32, %c0_i32_0 : i32, i32
  }
  func.func @transform_5(%arg0: i32, %arg1: i32) -> (i32, i32) {
    %c0_i32 = arith.constant 0 : i32
    %c0_i32_0 = arith.constant 0 : i32
    %c0_i32_1 = arith.constant 0 : i32
    return %c0_i32, %c0_i32_0 : i32, i32
  }
  func.func @transform_6(%arg0: i32, %arg1: i32) -> (i32, i32) {
    %c0_i32 = arith.constant 0 : i32
    %c0_i32_0 = arith.constant 0 : i32
    %c0_i32_1 = arith.constant 0 : i32
    return %c0_i32, %c0_i32_0 : i32, i32
  }
  func.func @transform_7(%arg0: i32, %arg1: i32) -> (i32, i32) {
    %c0_i32 = arith.constant 0 : i32
    %c0_i32_0 = arith.constant 0 : i32
    %c0_i32_1 = arith.constant 0 : i32
    return %c0_i32, %c0_i32_0 : i32, i32
  }
  func.func @transform_8(%arg0: i32, %arg1: i32) -> (i32, i32) {
    %c0_i32 = arith.constant 0 : i32
    %c0_i32_0 = arith.constant 0 : i32
    %c0_i32_1 = arith.constant 0 : i32
    return %c0_i32, %c0_i32_0 : i32, i32
  }
  func.func @transform_9(%arg0: i32, %arg1: i32) -> (i32, i32, i32) {
    %c0_i32 = arith.constant 0 : i32
    %c0_i32_0 = arith.constant 0 : i32
    return %arg1, %arg0, %c0_i32 : i32, i32, i32
  }
  func.func @transform_10(%arg0: i32, %arg1: i32) -> (i32, i32) {
    %c0_i32 = arith.constant 0 : i32
    %c0_i32_0 = arith.constant 0 : i32
    return %arg0, %c0_i32 : i32, i32
  }
}

</mosaic_0001>

<llo_original>
// kernel: tpu_custom_call.1
$region0: #{tpu_custom_call.1}
  #allocation0 [shape = 'u32[]', space=smem, size = 0x4, offset = 0x4, fixed_abs, tag = 'smem constant byte address 0x4 - core index']
  #allocation1 [shape = 'u32[144,128]{1,0:T(1,128)}', space=vmem, size = 0x12000, scoped, tag = 'internal scratch']
  %s0 = inlined_call_operand.vmem [shape: f32[32,16,4], index: 0, kind: input, shape index: {}]
  %s1 = inlined_call_operand.vmem [shape: f32[16,128], index: 1, kind: input, shape index: {}]
  %s2 = inlined_call_operand.vmem [shape: f32[128,128], index: 2, kind: input, shape index: {}]
  %s3 = inlined_call_operand.vmem [shape: f32[4,128], index: 3, kind: input, shape index: {}]
  %s4 = inlined_call_operand.vmem [shape: f32[1,128], index: 4, kind: input, shape index: {}]
  %s5 = inlined_call_operand.vmem [shape: f32[128,4], index: 5, kind: input, shape index: {}]
  %s6 = inlined_call_operand.vmem [shape: f32[1,4], index: 6, kind: input, shape index: {}]
  %s7 = inlined_call_operand.vmem [shape: f32[1,128], index: 7, kind: input, shape index: {}]
  %s8 = inlined_call_operand.vmem [shape: f32[1,128], index: 8, kind: input, shape index: {}]
  %s9 = inlined_call_operand.vmem [shape: f32[32,16,4], index: 9, kind: output, shape index: {0}]
  %s10 = inlined_call_operand.hbm [shape: f32[16,128], index: 10, kind: output, shape index: {1}]
  %11 = xla_tuple %s9, %s10
  %s12 = sld [smem:[#allocation0]]
  $region153: #{tpu_custom_call.1} parent=0
    _
  %s14 = ssub.s32 1, %s12
  %s15 = scalar_select 0, %s14, %s12
  $region1: #{tpu_custom_call.1} parent=0
    #allocation2 [shape = 'u8[65536]{0}', space=vmem, size = 0x10000, scoped, tag = 'input window, operand 0']
    #allocation3 [shape = 'u8[65536]{0}', space=vmem, size = 0x10000, scoped, tag = 'output window, operand 0']
    #allocation4 [shape = 'u8[8192]{0}', space=vmem, size = 0x2000, scoped, tag = 'output window, operand 1']
    #allocation5 [shape = 's32[2]{0}', space=sflag, size = 0x8, scoped, tag = 'scoped memory for tpu_custom_call.1']
    %16 = vsyncpa [#allocation5], 0
    %s17 = scalar_lea.sflag [#allocation5], 1
    %18 = vsyncpa %s17, 0
    loop: start=0, step=1, limit=10
    $region2: #{tpu_custom_call.1} parent=1 // loop_pre_header
      _
    $region3: #{tpu_custom_call.1} parent=1 // loop_header
      %s20 = sphi 0, %s24
      %p21 = scmp.ge.s32.totalorder %s20, 10
      %s27 = sphi 0, %s39
      %s28 = sphi 0, %s35
      %s29 = sphi 0, %s27
      %s30 = sphi 0, %s28
      %s31 = sphi 0, %s29
      %s32 = sphi 0, %s30
      %s44 = sphi 0, %s46
      %s47 = sphi 0, %s44
      %s48 = sphi 0, %s47
      %s64 = sphi 0, %s48
      %s70 = sphi 0, %s72
      %s73 = sphi 0, %s70
      %s74 = sphi 0, %s73
      %s90 = sphi 0, %s74
      %s94 = sphi 0, %s94
      %s96 = sphi 0, %s94
      %s97 = sphi 0, %s96
      %s111 = sphi 0, %s97
      %s115 = sphi 0, %s115
      %s117 = sphi 0, %s115
      %s118 = sphi 0, %s117
      %s132 = sphi 0, %s118
      %s136 = sphi 0, %s136
      %s138 = sphi 0, %s136
      %s139 = sphi 0, %s138
      %s153 = sphi 0, %s139
      %s157 = sphi 0, %s157
      %s159 = sphi 0, %s157
      %s160 = sphi 0, %s159
      %s174 = sphi 0, %s160
      %s178 = sphi 0, %s178
      %s180 = sphi 0, %s178
      %s181 = sphi 0, %s180
      %s195 = sphi 0, %s181
      %s199 = sphi 0, %s199
      %s201 = sphi 0, %s199
      %s202 = sphi 0, %s201
      %s216 = sphi 0, %s202
      %s220 = sphi 0, %s220
      %s222 = sphi 0, %s220
      %s223 = sphi 0, %s222
      %s237 = sphi 0, %s223
      %s245 = sphi 0, %s247
      %s248 = sphi 0, %s245
      %s249 = sphi 0, %s248
      %s265 = sphi 0, %s249
      %s271 = sphi 0, %s273
      %s274 = sphi 0, %s271
      %s275 = sphi 0, %s274
      %s291 = sphi 0, %s275
    $region4: #{tpu_custom_call.1} parent=1 // loop_header_branch
      %23 = sbr.rel (%p21) target = $region8
    $region5: #{tpu_custom_call.1} parent=1 // loop_body
      %s25 = ssub.s32 %s20, 1
      %s26 = ssub.s32 %s20, 2
      %s33 = sadd.s32 1, %s28
      %p34 = scmp.ge.s32.totalorder %s33, 4
      %s35 = scalar_select %p34, 0, %s33
      %s36 = sadd.s32 1, %s27
      %s37 = scalar_select %p34, %s36, %s27
      %p38 = scmp.ge.s32.totalorder %s37, 2
      %s39 = scalar_select %p38, 0, %s37
      %s40 = ssub.s32 %s28, %s35
      %s41 = ssub.s32 %s27, %s39
      %s42 = sor.u32 %s40, %s41
      %p43 = scmp.eq.s32.totalorder %s42, 0
      %s45 = sadd.s32 %s44, 1
      %s46 = scalar_select %p43, %s44, %s45
      %p49 = pneg %p43
      %p50 = scmp.eq.s32.totalorder %s20, 7
      %p51 = por %p49, %p50
      %p52 = scmp.ne.s32.totalorder %s44, %s47
      %p53 = scmp.eq.s32.totalorder %s20, 0
      %p54 = por %p52, %p53
      %p55 = scmp.ne.s32.totalorder %s44, %s47
      %p56 = scmp.eq.s32.totalorder %s25, 7
      %p57 = por %p55, %p56
      %p58 = scmp.ne.s32.totalorder %s47, %s48
      %p59 = scmp.eq.s32.totalorder %s25, 0
      %p60 = por %p58, %p59
      %p61 = scmp.ne.s32.totalorder %s47, %s48
      %p62 = scmp.eq.s32.totalorder %s26, 7
      %p63 = por %p61, %p62
      %p65 = scmp.ne.s32.totalorder %s48, %s64
      %p66 = scmp.eq.s32.totalorder %s26, 0
      %p67 = por %p65, %p66
      %s68 = ssub.s32 %s27, %s39
      %p69 = scmp.eq.s32.totalorder %s68, 0
      %s71 = sadd.s32 %s70, 1
      %s72 = scalar_select %p69, %s70, %s71
      %p75 = pneg %p69
      %p76 = scmp.eq.s32.totalorder %s20, 7
      %p77 = por %p75, %p76
      %p78 = scmp.ne.s32.totalorder %s70, %s73
      %p79 = scmp.eq.s32.totalorder %s20, 0
      %p80 = por %p78, %p79
      %p81 = scmp.ne.s32.totalorder %s70, %s73
      %p82 = scmp.eq.s32.totalorder %s25, 7
      %p83 = por %p81, %p82
      %p84 = scmp.ne.s32.totalorder %s73, %s74
      %p85 = scmp.eq.s32.totalorder %s25, 0
      %p86 = por %p84, %p85
      %p87 = scmp.ne.s32.totalorder %s73, %s74
      %p88 = scmp.eq.s32.totalorder %s26, 7
      %p89 = por %p87, %p88
      %p91 = scmp.ne.s32.totalorder %s74, %s90
      %p92 = scmp.eq.s32.totalorder %s26, 0
      %p93 = por %p91, %p92
      %s95 = sadd.s32 %s94, 1
      %p98 = scmp.eq.s32.totalorder %s20, 7
      %p99 = scmp.ne.s32.totalorder %s94, %s96
      %p100 = scmp.eq.s32.totalorder %s20, 0
      %p101 = por %p99, %p100
      %p102 = scmp.ne.s32.totalorder %s94, %s96
      %p103 = scmp.eq.s32.totalorder %s25, 7
      %p104 = por %p102, %p103
      %p105 = scmp.ne.s32.totalorder %s96, %s97
      %p106 = scmp.eq.s32.totalorder %s25, 0
      %p107 = por %p105, %p106
      %p108 = scmp.ne.s32.totalorder %s96, %s97
      %p109 = scmp.eq.s32.totalorder %s26, 7
      %p110 = por %p108, %p109
      %p112 = scmp.ne.s32.totalorder %s97, %s111
      %p113 = scmp.eq.s32.totalorder %s26, 0
      %p114 = por %p112, %p113
      %s116 = sadd.s32 %s115, 1
      %p119 = scmp.eq.s32.totalorder %s20, 7
      %p120 = scmp.ne.s32.totalorder %s115, %s117
      %p121 = scmp.eq.s32.totalorder %s20, 0
      %p122 = por %p120, %p121
      %p123 = scmp.ne.s32.totalorder %s115, %s117
      %p124 = scmp.eq.s32.totalorder %s25, 7
      %p125 = por %p123, %p124
      %p126 = scmp.ne.s32.totalorder %s117, %s118
      %p127 = scmp.eq.s32.totalorder %s25, 0
      %p128 = por %p126, %p127
      %p129 = scmp.ne.s32.totalorder %s117, %s118
      %p130 = scmp.eq.s32.totalorder %s26, 7
      %p131 = por %p129, %p130
      %p133 = scmp.ne.s32.totalorder %s118, %s132
      %p134 = scmp.eq.s32.totalorder %s26, 0
      %p135 = por %p133, %p134
      %s137 = sadd.s32 %s136, 1
      %p140 = scmp.eq.s32.totalorder %s20, 7
      %p141 = scmp.ne.s32.totalorder %s136, %s138
      %p142 = scmp.eq.s32.totalorder %s20, 0
      %p143 = por %p141, %p142
      %p144 = scmp.ne.s32.totalorder %s136, %s138
      %p145 = scmp.eq.s32.totalorder %s25, 7
      %p146 = por %p144, %p145
      %p147 = scmp.ne.s32.totalorder %s138, %s139
      %p148 = scmp.eq.s32.totalorder %s25, 0
      %p149 = por %p147, %p148
      %p150 = scmp.ne.s32.totalorder %s138, %s139
      %p151 = scmp.eq.s32.totalorder %s26, 7
      %p152 = por %p150, %p151
      %p154 = scmp.ne.s32.totalorder %s139, %s153
      %p155 = scmp.eq.s32.totalorder %s26, 0
      %p156 = por %p154, %p155
      %s158 = sadd.s32 %s157, 1
      %p161 = scmp.eq.s32.totalorder %s20, 7
      %p162 = scmp.ne.s32.totalorder %s157, %s159
      %p163 = scmp.eq.s32.totalorder %s20, 0
      %p164 = por %p162, %p163
      %p165 = scmp.ne.s32.totalorder %s157, %s159
      %p166 = scmp.eq.s32.totalorder %s25, 7
      %p167 = por %p165, %p166
      %p168 = scmp.ne.s32.totalorder %s159, %s160
      %p169 = scmp.eq.s32.totalorder %s25, 0
      %p170 = por %p168, %p169
      %p171 = scmp.ne.s32.totalorder %s159, %s160
      %p172 = scmp.eq.s32.totalorder %s26, 7
      %p173 = por %p171, %p172
      %p175 = scmp.ne.s32.totalorder %s160, %s174
      %p176 = scmp.eq.s32.totalorder %s26, 0
      %p177 = por %p175, %p176
      %s179 = sadd.s32 %s178, 1
      %p182 = scmp.eq.s32.totalorder %s20, 7
      %p183 = scmp.ne.s32.totalorder %s178, %s180
      %p184 = scmp.eq.s32.totalorder %s20, 0
      %p185 = por %p183, %p184
      %p186 = scmp.ne.s32.totalorder %s178, %s180
      %p187 = scmp.eq.s32.totalorder %s25, 7
      %p188 = por %p186, %p187
      %p189 = scmp.ne.s32.totalorder %s180, %s181
      %p190 = scmp.eq.s32.totalorder %s25, 0
      %p191 = por %p189, %p190
      %p192 = scmp.ne.s32.totalorder %s180, %s181
      %p193 = scmp.eq.s32.totalorder %s26, 7
      %p194 = por %p192, %p193
      %p196 = scmp.ne.s32.totalorder %s181, %s195
      %p197 = scmp.eq.s32.totalorder %s26, 0
      %p198 = por %p196, %p197
      %s200 = sadd.s32 %s199, 1
      %p203 = scmp.eq.s32.totalorder %s20, 7
      %p204 = scmp.ne.s32.totalorder %s199, %s201
      %p205 = scmp.eq.s32.totalorder %s20, 0
      %p206 = por %p204, %p205
      %p207 = scmp.ne.s32.totalorder %s199, %s201
      %p208 = scmp.eq.s32.totalorder %s25, 7
      %p209 = por %p207, %p208
      %p210 = scmp.ne.s32.totalorder %s201, %s202
      %p211 = scmp.eq.s32.totalorder %s25, 0
      %p212 = por %p210, %p211
      %p213 = scmp.ne.s32.totalorder %s201, %s202
      %p214 = scmp.eq.s32.totalorder %s26, 7
      %p215 = por %p213, %p214
      %p217 = scmp.ne.s32.totalorder %s202, %s216
      %p218 = scmp.eq.s32.totalorder %s26, 0
      %p219 = por %p217, %p218
      %s221 = sadd.s32 %s220, 1
      %p224 = scmp.eq.s32.totalorder %s20, 7
      %p225 = scmp.ne.s32.totalorder %s220, %s222
      %p226 = scmp.eq.s32.totalorder %s20, 0
      %p227 = por %p225, %p226
      %p228 = scmp.ne.s32.totalorder %s220, %s222
      %p229 = scmp.eq.s32.totalorder %s25, 7
      %p230 = por %p228, %p229
      %p231 = scmp.ne.s32.totalorder %s222, %s223
      %p232 = scmp.eq.s32.totalorder %s25, 0
      %p233 = por %p231, %p232
      %p234 = scmp.ne.s32.totalorder %s222, %s223
      %p235 = scmp.eq.s32.totalorder %s26, 7
      %p236 = por %p234, %p235
      %p238 = scmp.ne.s32.totalorder %s223, %s237
      %p239 = scmp.eq.s32.totalorder %s26, 0
      %p240 = por %p238, %p239
      %s241 = ssub.s32 %s28, %s35
      %s242 = ssub.s32 %s27, %s39
      %s243 = sor.u32 %s241, %s242
      %p244 = scmp.eq.s32.totalorder %s243, 0
      %s246 = sadd.s32 %s245, 1
      %s247 = scalar_select %p244, %s245, %s246
      %p250 = pneg %p244
      %p251 = scmp.eq.s32.totalorder %s20, 7
      %p252 = por %p250, %p251
      %p253 = scmp.ne.s32.totalorder %s245, %s248
      %p254 = scmp.eq.s32.totalorder %s20, 0
      %p255 = por %p253, %p254
      %p256 = scmp.ne.s32.totalorder %s245, %s248
      %p257 = scmp.eq.s32.totalorder %s25, 7
      %p258 = por %p256, %p257
      %p259 = scmp.ne.s32.totalorder %s248, %s249
      %p260 = scmp.eq.s32.totalorder %s25, 0
      %p261 = por %p259, %p260
      %p262 = scmp.ne.s32.totalorder %s248, %s249
      %p263 = scmp.eq.s32.totalorder %s26, 7
      %p264 = por %p262, %p263
      %p266 = scmp.ne.s32.totalorder %s249, %s265
      %p267 = scmp.eq.s32.totalorder %s26, 0
      %p268 = por %p266, %p267
      %s269 = ssub.s32 %s27, %s39
      %p270 = scmp.eq.s32.totalorder %s269, 0
      %s272 = sadd.s32 %s271, 1
      %s273 = scalar_select %p270, %s271, %s272
      %p276 = pneg %p270
      %p277 = scmp.eq.s32.totalorder %s20, 7
      %p278 = por %p276, %p277
      %p279 = scmp.ne.s32.totalorder %s271, %s274
      %p280 = scmp.eq.s32.totalorder %s20, 0
      %p281 = por %p279, %p280
      %p282 = scmp.ne.s32.totalorder %s271, %s274
      %p283 = scmp.eq.s32.totalorder %s25, 7
      %p284 = por %p282, %p283
      %p285 = scmp.ne.s32.totalorder %s274, %s275
      %p286 = scmp.eq.s32.totalorder %s25, 0
      %p287 = por %p285, %p286
      %p288 = scmp.ne.s32.totalorder %s274, %s275
      %p289 = scmp.eq.s32.totalorder %s26, 7
      %p290 = por %p288, %p289
      %p292 = scmp.ne.s32.totalorder %s275, %s291
      %p293 = scmp.eq.s32.totalorder %s26, 0
      %p294 = por %p292, %p293
      %p295 = scmp.le.s32.totalorder 1, %s20
      %p296 = scmp.lt.s32.totalorder %s20, 9
      %p297 = pnand %p295, %p296
      %p298 = pneg %p297
      // Predicated region
      $region9: #{tpu_custom_call.1} parent=5 // pred_check
        _
      $region10: #{tpu_custom_call.1} parent=5 // pred_check_branch
        %300 = sbr.rel (%p297) target = $region12
      $region11: #{tpu_custom_call.1} parent=5 // pred_region
        %s301 = ssub.s32 %s20, 1
        // Predicated region
        $region13: #{tpu_custom_call.1} parent=11 // pred_check
          %p302 = pneg %p107
        $region14: #{tpu_custom_call.1} parent=11 // pred_check_branch
          %304 = sbr.rel (%p302) target = $region16
        $region15: #{tpu_custom_call.1} parent=11 // pred_region
          _
        $region16: #{tpu_custom_call.1} parent=11 // pred_fallthru
          _
        // Predicated region
        $region17: #{tpu_custom_call.1} parent=11 // pred_check
          %p305 = pneg %p128
        $region18: #{tpu_custom_call.1} parent=11 // pred_check_branch
          %307 = sbr.rel (%p305) target = $region20
        $region19: #{tpu_custom_call.1} parent=11 // pred_region
          _
        $region20: #{tpu_custom_call.1} parent=11 // pred_fallthru
          _
        // Predicated region
        $region21: #{tpu_custom_call.1} parent=11 // pred_check
          %p308 = pneg %p149
        $region22: #{tpu_custom_call.1} parent=11 // pred_check_branch
          %310 = sbr.rel (%p308) target = $region24
        $region23: #{tpu_custom_call.1} parent=11 // pred_region
          _
        $region24: #{tpu_custom_call.1} parent=11 // pred_fallthru
          _
        // Predicated region
        $region25: #{tpu_custom_call.1} parent=11 // pred_check
          %p311 = pneg %p170
        $region26: #{tpu_custom_call.1} parent=11 // pred_check_branch
          %313 = sbr.rel (%p311) target = $region28
        $region27: #{tpu_custom_call.1} parent=11 // pred_region
          _
        $region28: #{tpu_custom_call.1} parent=11 // pred_fallthru
          _
        // Predicated region
        $region29: #{tpu_custom_call.1} parent=11 // pred_check
          %p314 = pneg %p191
        $region30: #{tpu_custom_call.1} parent=11 // pred_check_branch
          %316 = sbr.rel (%p314) target = $region32
        $region31: #{tpu_custom_call.1} parent=11 // pred_region
          _
        $region32: #{tpu_custom_call.1} parent=11 // pred_fallthru
          _
        // Predicated region
        $region33: #{tpu_custom_call.1} parent=11 // pred_check
          %p317 = pneg %p212
        $region34: #{tpu_custom_call.1} parent=11 // pred_check_branch
          %319 = sbr.rel (%p317) target = $region36
        $region35: #{tpu_custom_call.1} parent=11 // pred_region
          _
        $region36: #{tpu_custom_call.1} parent=11 // pred_fallthru
          _
        // Predicated region
        $region37: #{tpu_custom_call.1} parent=11 // pred_check
          %p320 = pneg %p233
        $region38: #{tpu_custom_call.1} parent=11 // pred_check_branch
          %322 = sbr.rel (%p320) target = $region40
        $region39: #{tpu_custom_call.1} parent=11 // pred_region
          _
        $region40: #{tpu_custom_call.1} parent=11 // pred_fallthru
          _
      $region12: #{tpu_custom_call.1} parent=5 // pred_fallthru
        _
      %p323 = scmp.lt.s32.totalorder %s20, 8
      // Predicated region
      $region41: #{tpu_custom_call.1} parent=5 // pred_check
        %p324 = pneg %p323
      $region42: #{tpu_custom_call.1} parent=5 // pred_check_branch
        %326 = sbr.rel (%p324) target = $region44
      $region43: #{tpu_custom_call.1} parent=5 // pred_region
        // Predicated region
        $region45: #{tpu_custom_call.1} parent=43 // pred_check
          %p327 = pneg %p54
        $region46: #{tpu_custom_call.1} parent=43 // pred_check_branch
          %329 = sbr.rel (%p327) target = $region48
        $region47: #{tpu_custom_call.1} parent=43 // pred_region
          %s330 = sand.u32 %s44, 1
          %s331 = sand.u32 %s44, 1
          %s332 = smul.addr %s331, 64
          %s333 = scalar_lea.vmem [#allocation2], %s332
          %s334 = smul.u32 8, %s28
          %s335 = smul.addr %s334, 2
          %s336 = sadd.s32 %s27, %s335
          %s337 = smul.addr %s336, 8
          %s338 = scalar_lea.vmem %s0, %s337
          // Predicated region
          $region49: #{tpu_custom_call.1} parent=47 // pred_check
            _
          $region50: #{tpu_custom_call.1} parent=47 // pred_check_branch
            %340 = sbr.rel (0) target = $region52
          $region51: #{tpu_custom_call.1} parent=47 // pred_region
            // Predicated region
            $region53: #{tpu_custom_call.1} parent=51 // pred_check
              _
            $region54: #{tpu_custom_call.1} parent=51 // pred_check_branch
              %342 = sbr.rel (0) target = $region56
            $region55: #{tpu_custom_call.1} parent=51 // pred_region
              // Predicated region
              $region68: #{tpu_custom_call.1} parent=55 // pred_check
                _
              $region69: #{tpu_custom_call.1} parent=55 // pred_check_branch
                %371 = sbr.rel (0) target = $region71
              $region70: #{tpu_custom_call.1} parent=55 // pred_region
                loop: start=0, step=1, limit=1
                $region72: #{tpu_custom_call.1} parent=70 // loop_pre_header
                  _
                $region73: #{tpu_custom_call.1} parent=70 // loop_header
                  %s373 = sphi 0, %s377
                  %p374 = scmp.ge.s32.totalorder %s373, 1
                  %s378 = sphi %s338, %s338
                  %s379 = sphi %s333, %s333
                $region74: #{tpu_custom_call.1} parent=70 // loop_header_branch
                  %376 = sbr.rel (%p374) target = $region78
                $region75: #{tpu_custom_call.1} parent=70 // loop_body
                  %v380 = vld [vmem:[%s378] sm:$0xff]
                  %381 = vst [vmem:[%s379] sm:$0xff] %v380
                  %v382 = vld [vmem:[%s378 + $0x10] sm:$0xff]
                  %383 = vst [vmem:[%s379 + $0x8] sm:$0xff] %v382
                  %v384 = vld [vmem:[%s378 + $0x20] sm:$0xff]
                  %385 = vst [vmem:[%s379 + $0x10] sm:$0xff] %v384
                  %v386 = vld [vmem:[%s378 + $0x30] sm:$0xff]
                  %387 = vst [vmem:[%s379 + $0x18] sm:$0xff] %v386
                  %v388 = vld [vmem:[%s378 + $0x40] sm:$0xff]
                  %389 = vst [vmem:[%s379 + $0x20] sm:$0xff] %v388
                  %v390 = vld [vmem:[%s378 + $0x50] sm:$0xff]
                  %391 = vst [vmem:[%s379 + $0x28] sm:$0xff] %v390
                  %v392 = vld [vmem:[%s378 + $0x60] sm:$0xff]
                  %393 = vst [vmem:[%s379 + $0x30] sm:$0xff] %v392
                  %v394 = vld [vmem:[%s378 + $0x70] sm:$0xff]
                  %395 = vst [vmem:[%s379 + $0x38] sm:$0xff] %v394
                $region76: #{tpu_custom_call.1} parent=70 // loop_footer
                  %s377 = sadd.s32 1, %s373
                $region77: #{tpu_custom_call.1} parent=70 // loop_footer_branch
                  %372 = sbr.rel target = $region73
                $region78: #{tpu_custom_call.1} parent=70 // loop_exit
                  _
              $region71: #{tpu_custom_call.1} parent=55 // pred_fallthru
                _
              // Predicated region
              $region79: #{tpu_custom_call.1} parent=55 // pred_check
                _
              $region80: #{tpu_custom_call.1} parent=55 // pred_check_branch
                %397 = sbr.rel target = $region82
              $region81: #{tpu_custom_call.1} parent=55 // pred_region
                _
              $region82: #{tpu_custom_call.1} parent=55 // pred_fallthru
                _
            $region56: #{tpu_custom_call.1} parent=51 // pred_fallthru
              _
            // Predicated region
            $region57: #{tpu_custom_call.1} parent=51 // pred_check
              _
            $region58: #{tpu_custom_call.1} parent=51 // pred_check_branch
              %344 = sbr.rel target = $region60
            $region59: #{tpu_custom_call.1} parent=51 // pred_region
              loop: start=0, step=1, limit=1
              $region61: #{tpu_custom_call.1} parent=59 // loop_pre_header
                _
              $region62: #{tpu_custom_call.1} parent=59 // loop_header
                %s347 = sphi 0, %s351
                %p348 = scmp.ge.s32.totalorder %s347, 1
                %s352 = sphi %s338, %s338
                %s353 = sphi %s333, %s333
              $region63: #{tpu_custom_call.1} parent=59 // loop_header_branch
                %350 = sbr.rel (%p348) target = $region67
              $region64: #{tpu_custom_call.1} parent=59 // loop_body
                %v354 = vld [vmem:[%s352] sm:$0xff]
                %355 = vst [vmem:[%s353] sm:$0xff] %v354
                %v356 = vld [vmem:[%s352 + $0x10] sm:$0xff]
                %357 = vst [vmem:[%s353 + $0x8] sm:$0xff] %v356
                %v358 = vld [vmem:[%s352 + $0x20] sm:$0xff]
                %359 = vst [vmem:[%s353 + $0x10] sm:$0xff] %v358
                %v360 = vld [vmem:[%s352 + $0x30] sm:$0xff]
                %361 = vst [vmem:[%s353 + $0x18] sm:$0xff] %v360
                %v362 = vld [vmem:[%s352 + $0x40] sm:$0xff]
                %363 = vst [vmem:[%s353 + $0x20] sm:$0xff] %v362
                %v364 = vld [vmem:[%s352 + $0x50] sm:$0xff]
                %365 = vst [vmem:[%s353 + $0x28] sm:$0xff] %v364
                %v366 = vld [vmem:[%s352 + $0x60] sm:$0xff]
                %367 = vst [vmem:[%s353 + $0x30] sm:$0xff] %v366
                %v368 = vld [vmem:[%s352 + $0x70] sm:$0xff]
                %369 = vst [vmem:[%s353 + $0x38] sm:$0xff] %v368
              $region65: #{tpu_custom_call.1} parent=59 // loop_footer
                %s351 = sadd.s32 1, %s347
              $region66: #{tpu_custom_call.1} parent=59 // loop_footer_branch
                %346 = sbr.rel target = $region62
              $region67: #{tpu_custom_call.1} parent=59 // loop_exit
                _
            $region60: #{tpu_custom_call.1} parent=51 // pred_fallthru
              _
          $region52: #{tpu_custom_call.1} parent=47 // pred_fallthru
            _
          %398 = vnop
        $region48: #{tpu_custom_call.1} parent=43 // pred_fallthru
          _
        // Predicated region
        $region83: #{tpu_custom_call.1} parent=43 // pred_check
          %p399 = pneg %p80
        $region84: #{tpu_custom_call.1} parent=43 // pred_check_branch
          %401 = sbr.rel (%p399) target = $region86
        $region85: #{tpu_custom_call.1} parent=43 // pred_region
          %p402 = scmp.lt.s32.totalorder %s27, 1
          %s403 = scalar_select %p402, %s27, 1
          %s404 = smul.addr %s403, 8
          %s405 = scalar_lea.vmem %s1, %s404
        $region86: #{tpu_custom_call.1} parent=43 // pred_fallthru
          _
      $region44: #{tpu_custom_call.1} parent=5 // pred_fallthru
        _
      %p406 = scmp.le.s32.totalorder 1, %s20
      %p407 = scmp.lt.s32.totalorder %s20, 9
      %p408 = pnand %p406, %p407
      %p409 = pneg %p408
      // Predicated region
      $region87: #{tpu_custom_call.1} parent=5 // pred_check
        _
      $region88: #{tpu_custom_call.1} parent=5 // pred_check_branch
        %411 = sbr.rel (%p408) target = $region90
      $region89: #{tpu_custom_call.1} parent=5 // pred_region
        %s412 = ssub.s32 %s20, 1
        %s413 = sand.u32 %s47, 1
        %s414 = sand.u32 %s47, 1
        %s415 = smul.addr %s414, 64
        %s416 = scalar_lea.vmem [#allocation2], %s415
        // Predicated region
        $region91: #{tpu_custom_call.1} parent=89 // pred_check
          %p417 = pneg %p60
        $region92: #{tpu_custom_call.1} parent=89 // pred_check_branch
          %419 = sbr.rel (%p417) target = $region94
        $region93: #{tpu_custom_call.1} parent=89 // pred_region
          _
        $region94: #{tpu_custom_call.1} parent=89 // pred_fallthru
          _
        %s420 = sand.u32 %s47, 1
        %s421 = sand.u32 %s47, 1
        %s422 = smul.addr %s421, 64
        %s423 = scalar_lea.vmem [#allocation2], %s422
        %p424 = pneg %p60
        %p425 = pneg %p57
        %p426 = scmp.lt.s32.totalorder %s29, 1
        %s427 = scalar_select %p426, %s29, 1
        %s428 = smul.addr %s427, 8
        %s429 = scalar_lea.vmem %s1, %s428
        %p430 = pneg %p86
        %p431 = pneg %p83
        %p432 = pneg %p107
        %p433 = pneg %p104
        %p434 = pneg %p128
        %p435 = pneg %p125
        %p436 = pneg %p149
        %p437 = pneg %p146
        %p438 = pneg %p170
        %p439 = pneg %p167
        %p440 = pneg %p191
        %p441 = pneg %p188
        %p442 = pneg %p212
        %p443 = pneg %p209
        %p444 = pneg %p233
        %p445 = pneg %p230
        %p446 = pneg %p261
        %p447 = pneg %p258
        %s448 = sand.u32 %s248, 1
        %s449 = sand.u32 %s248, 1
        %s450 = smul.addr %s449, 64
        %s451 = scalar_lea.vmem [#allocation3], %s450
        %p452 = pneg %p287
        %p453 = pneg %p284
        %s454 = sand.u32 %s274, 1
        %s455 = scalar_lea.sflag [#allocation5], %s454
        %s456 = sand.u32 %s274, 1
        %s457 = smul.addr %s456, 8
        %s458 = scalar_lea.vmem [#allocation4], %s457
        %s459 = smul.u32 8, %s30
        %p460 = scmp.lt.s32.totalorder %s29, 1
        %s461 = scalar_select %p460, %s29, 1
        %s462 = smul.addr %s461, 8
        %s463 = scalar_lea.vmem %s1, %s462
        %s464 = smul.u32 8, %s30
        %p465 = scmp.eq.s32.totalorder %s30, 0
        // Predicated region
        $region95: #{tpu_custom_call.1} parent=89 // pred_check
          %p466 = pneg %p465
        $region96: #{tpu_custom_call.1} parent=89 // pred_check_branch
          %468 = sbr.rel (%p466) target = $region98
        $region97: #{tpu_custom_call.1} parent=89 // pred_region
          %v469 = vld [vmem:[%s463] sm:$0xff]
          %470 = vst [vmem:[%s458] sm:$0xff] %v469
        $region98: #{tpu_custom_call.1} parent=89 // pred_fallthru
          _
        %v471 = vld [vmem:[%s2] sm:$0xff]
        %v472 = vld [vmem:[%s2 + $0x8] sm:$0xff]
        %v473 = vld [vmem:[%s2 + $0x10] sm:$0xff]
        %v474 = vld [vmem:[%s2 + $0x18] sm:$0xff]
        %v475 = vld [vmem:[%s2 + $0x20] sm:$0xff]
        %v476 = vld [vmem:[%s2 + $0x28] sm:$0xff]
        %v477 = vld [vmem:[%s2 + $0x30] sm:$0xff]
        %v478 = vld [vmem:[%s2 + $0x38] sm:$0xff]
        %v479 = vld [vmem:[%s2 + $0x40] sm:$0xff]
        %v480 = vld [vmem:[%s2 + $0x48] sm:$0xff]
        %v481 = vld [vmem:[%s2 + $0x50] sm:$0xff]
        %v482 = vld [vmem:[%s2 + $0x58] sm:$0xff]
        %v483 = vld [vmem:[%s2 + $0x60] sm:$0xff]
        %v484 = vld [vmem:[%s2 + $0x68] sm:$0xff]
        %v485 = vld [vmem:[%s2 + $0x70] sm:$0xff]
        %v486 = vld [vmem:[%s2 + $0x78] sm:$0xff]
        %v487 = vld [vmem:[%s3] sm:$0xf]
        %v488 = vld [vmem:[%s5] sm:$0xff]
        %v489 = vld [vmem:[%s5 + $0x8] sm:$0xff]
        %v490 = vld [vmem:[%s5 + $0x10] sm:$0xff]
        %v491 = vld [vmem:[%s5 + $0x18] sm:$0xff]
        %v492 = vld [vmem:[%s5 + $0x20] sm:$0xff]
        %v493 = vld [vmem:[%s5 + $0x28] sm:$0xff]
        %v494 = vld [vmem:[%s5 + $0x30] sm:$0xff]
        %v495 = vld [vmem:[%s5 + $0x38] sm:$0xff]
        %v496 = vld [vmem:[%s5 + $0x40] sm:$0xff]
        %v497 = vld [vmem:[%s5 + $0x48] sm:$0xff]
        %v498 = vld [vmem:[%s5 + $0x50] sm:$0xff]
        %v499 = vld [vmem:[%s5 + $0x58] sm:$0xff]
        %v500 = vld [vmem:[%s5 + $0x60] sm:$0xff]
        %v501 = vld [vmem:[%s5 + $0x68] sm:$0xff]
        %v502 = vld [vmem:[%s5 + $0x70] sm:$0xff]
        %v503 = vld [vmem:[%s5 + $0x78] sm:$0xff]
        %v504 = vld [vmem:[%s4] sm:$0x1]
        %v506 = vlaneseq
        %v507 = vshrl.u32 %v506, 7
        %v508 = vsub.s32 0, %v507
        %v509 = vrot.slane %v504, %v508
        %v511 = vld [vmem:[%s6] sm:$0x1]
        %v513 = vlaneseq
        %v514 = vshrl.u32 %v513, 7
        %v515 = vsub.s32 0, %v514
        %v516 = vrot.slane %v511, %v515
        %v518 = vld [vmem:[%s7] sm:$0x1]
        %v520 = vlaneseq
        %v521 = vshrl.u32 %v520, 7
        %v522 = vsub.s32 0, %v521
        %v523 = vrot.slane %v518, %v522
        %v525 = vld [vmem:[%s8] sm:$0x1]
        %v527 = vlaneseq
        %v528 = vshrl.u32 %v527, 7
        %v529 = vsub.s32 0, %v528
        %v530 = vrot.slane %v525, %v529
        %v532 = vld [vmem:[%s458] sm:$0xff]
        %v533 = vld [vmem:[%s416] sm:$0xff]
        %vm534 = vcmask 31744
        %v536 = vsel %vm534, %v533, 0
        %vm538 = vcmask 1043456
        %v540 = vsel %vm538, %v487, 0
        %542 = vmatprep.subr.mxu0 0.0
        %543 = vmatpush1.msra.mxu0 %v540
        %544 = vmatprep.subr.mxu0 0.0
        %545 = vmatpush1.msra.mxu0 0.0
        %546 = vmatprep.subr.mxu0 0.0
        %547 = vmatpush1.msra.mxu0 0.0
        %548 = vmatprep.subr.mxu0 0.0
        %549 = vmatpush1.msra.mxu0 0.0
        %550 = vmatprep.subr.mxu0 0.0
        %551 = vmatpush1.msra.mxu0 0.0
        %552 = vmatprep.subr.mxu0 0.0
        %553 = vmatpush1.msra.mxu0 0.0
        %554 = vmatprep.subr.mxu0 0.0
        %555 = vmatpush1.msra.mxu0 0.0
        %556 = vmatprep.subr.mxu0 0.0
        %557 = vmatpush1.msra.mxu0 0.0
        %558 = vmatprep.subr.mxu0 0.0
        %559 = vmatpush1.msra.mxu0 0.0
        %560 = vmatprep.subr.mxu0 0.0
        %561 = vmatpush1.msra.mxu0 0.0
        %562 = vmatprep.subr.mxu0 0.0
        %563 = vmatpush1.msra.mxu0 0.0
        %564 = vmatprep.subr.mxu0 0.0
        %565 = vmatpush1.msra.mxu0 0.0
        %566 = vmatprep.subr.mxu0 0.0
        %567 = vmatpush1.msra.mxu0 0.0
        %568 = vmatprep.subr.mxu0 0.0
        %569 = vmatpush1.msra.mxu0 0.0
        %570 = vmatprep.subr.mxu0 0.0
        %571 = vmatpush1.msra.mxu0 0.0
        %572 = vmatprep.subr.mxu0 0.0
        %573 = vmatpush1.msra.mxu0 0.0
        %574 = vmatprep.subr.mxu0 0.0
        %575 = vmatpush1.msra.mxu0 0.0
        %576 = vmatprep.subr.mxu0 0.0
        %577 = vmatpush1.msra.mxu0 0.0
        %578 = vmatprep.subr.mxu0 0.0
        %579 = vmatpush1.msra.mxu0 0.0
        %580 = vmatprep.subr.mxu0 0.0
        %581 = vmatpush1.msra.mxu0 0.0
        %582 = vmatprep.subr.mxu0 0.0
        %583 = vmatpush1.msra.mxu0 0.0
        %584 = vmatprep.subr.mxu0 0.0
        %585 = vmatpush1.msra.mxu0 0.0
        %586 = vmatprep.subr.mxu0 0.0
        %587 = vmatpush1.msra.mxu0 0.0
        %588 = vmatprep.subr.mxu0 0.0
        %589 = vmatpush1.msra.mxu0 0.0
        %590 = vmatprep.subr.mxu0 0.0
        %591 = vmatpush1.msra.mxu0 0.0
        %592 = vmatprep.subr.mxu0 0.0
        %593 = vmatpush1.msra.mxu0 0.0
        %594 = vmatprep.subr.mxu0 0.0
        %595 = vmatpush1.msra.mxu0 0.0
        %596 = vmatprep.subr.mxu0 0.0
        %597 = vmatpush1.msra.mxu0 0.0
        %598 = vmatprep.subr.mxu0 0.0
        %599 = vmatpush1.msra.mxu0 0.0
        %600 = vmatprep.subr.mxu0 0.0
        %601 = vmatpush1.msra.mxu0 0.0
        %602 = vmatprep.subr.mxu0 0.0
        %603 = vmatpush1.msra.mxu0 0.0
        %604 = vmatprep.subr.mxu0 0.0
        %605 = vmatpush1.msra.mxu0 0.0
        %606 = vmatprep.mubr.f32.mxu0 0.0
        %607 = vmatmul.mubr.f32.gmra.mrb[0].mxu0 %v536
        %v608 = vpop.f32.mrb[0].mxu0
        %v609 = vadd.f32 0.0, %v608
        %v610 = vpop.f32.mrb[0].mxu0
        %611 = vdwg.mxu0
        %612 = vmatprep.subr.mxu0 0.0
        %613 = vmatpush1.msra.mxu0 %v471
        %614 = vmatprep.subr.mxu0 0.0
        %615 = vmatpush1.msra.mxu0 %v472
        %616 = vmatprep.subr.mxu0 0.0
        %617 = vmatpush1.msra.mxu0 %v473
        %618 = vmatprep.subr.mxu0 0.0
        %619 = vmatpush1.msra.mxu0 %v474
        %620 = vmatprep.subr.mxu0 0.0
        %621 = vmatpush1.msra.mxu0 %v475
        %622 = vmatprep.subr.mxu0 0.0
        %623 = vmatpush1.msra.mxu0 %v476
        %624 = vmatprep.subr.mxu0 0.0
        %625 = vmatpush1.msra.mxu0 %v477
        %626 = vmatprep.subr.mxu0 0.0
        %627 = vmatpush1.msra.mxu0 %v478
        %628 = vmatprep.subr.mxu0 0.0
        %629 = vmatpush1.msra.mxu0 %v479
        %630 = vmatprep.subr.mxu0 0.0
        %631 = vmatpush1.msra.mxu0 %v480
        %632 = vmatprep.subr.mxu0 0.0
        %633 = vmatpush1.msra.mxu0 %v481
        %634 = vmatprep.subr.mxu0 0.0
        %635 = vmatpush1.msra.mxu0 %v482
        %636 = vmatprep.subr.mxu0 0.0
        %637 = vmatpush1.msra.mxu0 %v483
        %638 = vmatprep.subr.mxu0 0.0
        %639 = vmatpush1.msra.mxu0 %v484
        %640 = vmatprep.subr.mxu0 0.0
        %641 = vmatpush1.msra.mxu0 %v485
        %642 = vmatprep.subr.mxu0 0.0
        %643 = vmatpush1.msra.mxu0 %v486
        %644 = vmatprep.subr.mxu0 0.0
        %645 = vmatpush1.msra.mxu0 0.0
        %646 = vmatprep.subr.mxu0 0.0
        %647 = vmatpush1.msra.mxu0 0.0
        %648 = vmatprep.subr.mxu0 0.0
        %649 = vmatpush1.msra.mxu0 0.0
        %650 = vmatprep.subr.mxu0 0.0
        %651 = vmatpush1.msra.mxu0 0.0
        %652 = vmatprep.subr.mxu0 0.0
        %653 = vmatpush1.msra.mxu0 0.0
        %654 = vmatprep.subr.mxu0 0.0
        %655 = vmatpush1.msra.mxu0 0.0
        %656 = vmatprep.subr.mxu0 0.0
        %657 = vmatpush1.msra.mxu0 0.0
        %658 = vmatprep.subr.mxu0 0.0
        %659 = vmatpush1.msra.mxu0 0.0
        %660 = vmatprep.subr.mxu0 0.0
        %661 = vmatpush1.msra.mxu0 0.0
        %662 = vmatprep.subr.mxu0 0.0
        %663 = vmatpush1.msra.mxu0 0.0
        %664 = vmatprep.subr.mxu0 0.0
        %665 = vmatpush1.msra.mxu0 0.0
        %666 = vmatprep.subr.mxu0 0.0
        %667 = vmatpush1.msra.mxu0 0.0
        %668 = vmatprep.subr.mxu0 0.0
        %669 = vmatpush1.msra.mxu0 0.0
        %670 = vmatprep.subr.mxu0 0.0
        %671 = vmatpush1.msra.mxu0 0.0
        %672 = vmatprep.subr.mxu0 0.0
        %673 = vmatpush1.msra.mxu0 0.0
        %674 = vmatprep.subr.mxu0 0.0
        %675 = vmatpush1.msra.mxu0 0.0
        %676 = vmatprep.mubr.f32.mxu0 0.0
        %677 = vmatmul.mubr.f32.gmra.mrb[0].mxu0 %v532
        %v678 = vpop.f32.mrb[0].mxu0
        %v679 = vadd.f32 %v609, %v678
        %v680 = vpop.f32.mrb[0].mxu0
        %681 = vdwg.mxu0
        %v682 = vadd.f32 %v679, %v509
        %v683 = vmul.f32 %v523, %v532
        %v684 = vmul.f32 %v530, %v682
        %v685 = vadd.f32 %v683, %v684
        %v686 = vtanh.pop %v685
        %687 = vmatprep.subr.mxu0 0.0
        %688 = vmatpush1.msra.mxu0 %v488
        %689 = vmatprep.subr.mxu0 0.0
        %690 = vmatpush1.msra.mxu0 %v489
        %691 = vmatprep.subr.mxu0 0.0
        %692 = vmatpush1.msra.mxu0 %v490
        %693 = vmatprep.subr.mxu0 0.0
        %694 = vmatpush1.msra.mxu0 %v491
        %695 = vmatprep.subr.mxu0 0.0
        %696 = vmatpush1.msra.mxu0 %v492
        %697 = vmatprep.subr.mxu0 0.0
        %698 = vmatpush1.msra.mxu0 %v493
        %699 = vmatprep.subr.mxu0 0.0
        %700 = vmatpush1.msra.mxu0 %v494
        %701 = vmatprep.subr.mxu0 0.0
        %702 = vmatpush1.msra.mxu0 %v495
        %703 = vmatprep.subr.mxu0 0.0
        %704 = vmatpush1.msra.mxu0 %v496
        %705 = vmatprep.subr.mxu0 0.0
        %706 = vmatpush1.msra.mxu0 %v497
        %707 = vmatprep.subr.mxu0 0.0
        %708 = vmatpush1.msra.mxu0 %v498
        %709 = vmatprep.subr.mxu0 0.0
        %710 = vmatpush1.msra.mxu0 %v499
        %711 = vmatprep.subr.mxu0 0.0
        %712 = vmatpush1.msra.mxu0 %v500
        %713 = vmatprep.subr.mxu0 0.0
        %714 = vmatpush1.msra.mxu0 %v501
        %715 = vmatprep.subr.mxu0 0.0
        %716 = vmatpush1.msra.mxu0 %v502
        %717 = vmatprep.subr.mxu0 0.0
        %718 = vmatpush1.msra.mxu0 %v503
        %719 = vmatprep.subr.mxu0 0.0
        %720 = vmatpush1.msra.mxu0 0.0
        %721 = vmatprep.subr.mxu0 0.0
        %722 = vmatpush1.msra.mxu0 0.0
        %723 = vmatprep.subr.mxu0 0.0
        %724 = vmatpush1.msra.mxu0 0.0
        %725 = vmatprep.subr.mxu0 0.0
        %726 = vmatpush1.msra.mxu0 0.0
        %727 = vmatprep.subr.mxu0 0.0
        %728 = vmatpush1.msra.mxu0 0.0
        %729 = vmatprep.subr.mxu0 0.0
        %730 = vmatpush1.msra.mxu0 0.0
        %731 = vmatprep.subr.mxu0 0.0
        %732 = vmatpush1.msra.mxu0 0.0
        %733 = vmatprep.subr.mxu0 0.0
        %734 = vmatpush1.msra.mxu0 0.0
        %735 = vmatprep.subr.mxu0 0.0
        %736 = vmatpush1.msra.mxu0 0.0
        %737 = vmatprep.subr.mxu0 0.0
        %738 = vmatpush1.msra.mxu0 0.0
        %739 = vmatprep.subr.mxu0 0.0
        %740 = vmatpush1.msra.mxu0 0.0
        %741 = vmatprep.subr.mxu0 0.0
        %742 = vmatpush1.msra.mxu0 0.0
        %743 = vmatprep.subr.mxu0 0.0
        %744 = vmatpush1.msra.mxu0 0.0
        %745 = vmatprep.subr.mxu0 0.0
        %746 = vmatpush1.msra.mxu0 0.0
        %747 = vmatprep.subr.mxu0 0.0
        %748 = vmatpush1.msra.mxu0 0.0
        %749 = vmatprep.subr.mxu0 0.0
        %750 = vmatpush1.msra.mxu0 0.0
        %751 = vmatprep.mubr.f32.mxu0 0.0
        %752 = vmatmul.mubr.f32.gmra.mrb[0].mxu0 %v686
        %v753 = vpop.f32.mrb[0].mxu0
        %v754 = vadd.f32 %v516, %v753
        %v755 = vpop.f32.mrb[0].mxu0
        %756 = vdwg.mxu0
        %v757 = vtanh.pop %v754
        %758 = vst.msk [vmem:[%s451] sm:$0xff] %vm534, %v757
        %s759 = scalar_lea.vmem %s416, 8 [#allocation2]
        %v760 = vld [vmem:[%s759] sm:$0xff]
        %v762 = vsel %vm534, %v760, 0
        %764 = vmatprep.subr.mxu0 0.0
        %765 = vmatpush1.msra.mxu0 %v540
        %766 = vmatprep.subr.mxu0 0.0
        %767 = vmatpush1.msra.mxu0 0.0
        %768 = vmatprep.subr.mxu0 0.0
        %769 = vmatpush1.msra.mxu0 0.0
        %770 = vmatprep.subr.mxu0 0.0
        %771 = vmatpush1.msra.mxu0 0.0
        %772 = vmatprep.subr.mxu0 0.0
        %773 = vmatpush1.msra.mxu0 0.0
        %774 = vmatprep.subr.mxu0 0.0
        %775 = vmatpush1.msra.mxu0 0.0
        %776 = vmatprep.subr.mxu0 0.0
        %777 = vmatpush1.msra.mxu0 0.0
        %778 = vmatprep.subr.mxu0 0.0
        %779 = vmatpush1.msra.mxu0 0.0
        %780 = vmatprep.subr.mxu0 0.0
        %781 = vmatpush1.msra.mxu0 0.0
        %782 = vmatprep.subr.mxu0 0.0
        %783 = vmatpush1.msra.mxu0 0.0
        %784 = vmatprep.subr.mxu0 0.0
        %785 = vmatpush1.msra.mxu0 0.0
        %786 = vmatprep.subr.mxu0 0.0
        %787 = vmatpush1.msra.mxu0 0.0
        %788 = vmatprep.subr.mxu0 0.0
        %789 = vmatpush1.msra.mxu0 0.0
        %790 = vmatprep.subr.mxu0 0.0
        %791 = vmatpush1.msra.mxu0 0.0
        %792 = vmatprep.subr.mxu0 0.0
        %793 = vmatpush1.msra.mxu0 0.0
        %794 = vmatprep.subr.mxu0 0.0
        %795 = vmatpush1.msra.mxu0 0.0
        %796 = vmatprep.subr.mxu0 0.0
        %797 = vmatpush1.msra.mxu0 0.0
        %798 = vmatprep.subr.mxu0 0.0
        %799 = vmatpush1.msra.mxu0 0.0
        %800 = vmatprep.subr.mxu0 0.0
        %801 = vmatpush1.msra.mxu0 0.0
        %802 = vmatprep.subr.mxu0 0.0
        %803 = vmatpush1.msra.mxu0 0.0
        %804 = vmatprep.subr.mxu0 0.0
        %805 = vmatpush1.msra.mxu0 0.0
        %806 = vmatprep.subr.mxu0 0.0
        %807 = vmatpush1.msra.mxu0 0.0
        %808 = vmatprep.subr.mxu0 0.0
        %809 = vmatpush1.msra.mxu0 0.0
        %810 = vmatprep.subr.mxu0 0.0
        %811 = vmatpush1.msra.mxu0 0.0
        %812 = vmatprep.subr.mxu0 0.0
        %813 = vmatpush1.msra.mxu0 0.0
        %814 = vmatprep.subr.mxu0 0.0
        %815 = vmatpush1.msra.mxu0 0.0
        %816 = vmatprep.subr.mxu0 0.0
        %817 = vmatpush1.msra.mxu0 0.0
        %818 = vmatprep.subr.mxu0 0.0
        %819 = vmatpush1.msra.mxu0 0.0
        %820 = vmatprep.subr.mxu0 0.0
        %821 = vmatpush1.msra.mxu0 0.0
        %822 = vmatprep.subr.mxu0 0.0
        %823 = vmatpush1.msra.mxu0 0.0
        %824 = vmatprep.subr.mxu0 0.0
        %825 = vmatpush1.msra.mxu0 0.0
        %826 = vmatprep.subr.mxu0 0.0
        %827 = vmatpush1.msra.mxu0 0.0
        %828 = vmatprep.mubr.f32.mxu0 0.0
        %829 = vmatmul.mubr.f32.gmra.mrb[0].mxu0 %v762
        %v830 = vpop.f32.mrb[0].mxu0
        %v831 = vadd.f32 0.0, %v830
        %v832 = vpop.f32.mrb[0].mxu0
        %833 = vdwg.mxu0
        %834 = vmatprep.subr.mxu0 0.0
        %835 = vmatpush1.msra.mxu0 %v471
        %836 = vmatprep.subr.mxu0 0.0
        %837 = vmatpush1.msra.mxu0 %v472
        %838 = vmatprep.subr.mxu0 0.0
        %839 = vmatpush1.msra.mxu0 %v473
        %840 = vmatprep.subr.mxu0 0.0
        %841 = vmatpush1.msra.mxu0 %v474
        %842 = vmatprep.subr.mxu0 0.0
        %843 = vmatpush1.msra.mxu0 %v475
        %844 = vmatprep.subr.mxu0 0.0
        %845 = vmatpush1.msra.mxu0 %v476
        %846 = vmatprep.subr.mxu0 0.0
        %847 = vmatpush1.msra.mxu0 %v477
        %848 = vmatprep.subr.mxu0 0.0
        %849 = vmatpush1.msra.mxu0 %v478
        %850 = vmatprep.subr.mxu0 0.0
        %851 = vmatpush1.msra.mxu0 %v479
        %852 = vmatprep.subr.mxu0 0.0
        %853 = vmatpush1.msra.mxu0 %v480
        %854 = vmatprep.subr.mxu0 0.0
        %855 = vmatpush1.msra.mxu0 %v481
        %856 = vmatprep.subr.mxu0 0.0
        %857 = vmatpush1.msra.mxu0 %v482
        %858 = vmatprep.subr.mxu0 0.0
        %859 = vmatpush1.msra.mxu0 %v483
        %860 = vmatprep.subr.mxu0 0.0
        %861 = vmatpush1.msra.mxu0 %v484
        %862 = vmatprep.subr.mxu0 0.0
        %863 = vmatpush1.msra.mxu0 %v485
        %864 = vmatprep.subr.mxu0 0.0
        %865 = vmatpush1.msra.mxu0 %v486
        %866 = vmatprep.subr.mxu0 0.0
        %867 = vmatpush1.msra.mxu0 0.0
        %868 = vmatprep.subr.mxu0 0.0
        %869 = vmatpush1.msra.mxu0 0.0
        %870 = vmatprep.subr.mxu0 0.0
        %871 = vmatpush1.msra.mxu0 0.0
        %872 = vmatprep.subr.mxu0 0.0
        %873 = vmatpush1.msra.mxu0 0.0
        %874 = vmatprep.subr.mxu0 0.0
        %875 = vmatpush1.msra.mxu0 0.0
        %876 = vmatprep.subr.mxu0 0.0
        %877 = vmatpush1.msra.mxu0 0.0
        %878 = vmatprep.subr.mxu0 0.0
        %879 = vmatpush1.msra.mxu0 0.0
        %880 = vmatprep.subr.mxu0 0.0
        %881 = vmatpush1.msra.mxu0 0.0
        %882 = vmatprep.subr.mxu0 0.0
        %883 = vmatpush1.msra.mxu0 0.0
        %884 = vmatprep.subr.mxu0 0.0
        %885 = vmatpush1.msra.mxu0 0.0
        %886 = vmatprep.subr.mxu0 0.0
        %887 = vmatpush1.msra.mxu0 0.0
        %888 = vmatprep.subr.mxu0 0.0
        %889 = vmatpush1.msra.mxu0 0.0
        %890 = vmatprep.subr.mxu0 0.0
        %891 = vmatpush1.msra.mxu0 0.0
        %892 = vmatprep.subr.mxu0 0.0
        %893 = vmatpush1.msra.mxu0 0.0
        %894 = vmatprep.subr.mxu0 0.0
        %895 = vmatpush1.msra.mxu0 0.0
        %896 = vmatprep.subr.mxu0 0.0
        %897 = vmatpush1.msra.mxu0 0.0
        %898 = vmatprep.mubr.f32.mxu0 0.0
        %899 = vmatmul.mubr.f32.gmra.mrb[0].mxu0 %v686
        %v900 = vpop.f32.mrb[0].mxu0
        %v901 = vadd.f32 %v831, %v900
        %v902 = vpop.f32.mrb[0].mxu0
        %903 = vdwg.mxu0
        %v904 = vadd.f32 %v901, %v509
        %v905 = vmul.f32 %v523, %v686
        %v906 = vmul.f32 %v530, %v904
        %v907 = vadd.f32 %v905, %v906
        %v908 = vtanh.pop %v907
        %909 = vmatprep.subr.mxu0 0.0
        %910 = vmatpush1.msra.mxu0 %v488
        %911 = vmatprep.subr.mxu0 0.0
        %912 = vmatpush1.msra.mxu0 %v489
        %913 = vmatprep.subr.mxu0 0.0
        %914 = vmatpush1.msra.mxu0 %v490
        %915 = vmatprep.subr.mxu0 0.0
        %916 = vmatpush1.msra.mxu0 %v491
        %917 = vmatprep.subr.mxu0 0.0
        %918 = vmatpush1.msra.mxu0 %v492
        %919 = vmatprep.subr.mxu0 0.0
        %920 = vmatpush1.msra.mxu0 %v493
        %921 = vmatprep.subr.mxu0 0.0
        %922 = vmatpush1.msra.mxu0 %v494
        %923 = vmatprep.subr.mxu0 0.0
        %924 = vmatpush1.msra.mxu0 %v495
        %925 = vmatprep.subr.mxu0 0.0
        %926 = vmatpush1.msra.mxu0 %v496
        %927 = vmatprep.subr.mxu0 0.0
        %928 = vmatpush1.msra.mxu0 %v497
        %929 = vmatprep.subr.mxu0 0.0
        %930 = vmatpush1.msra.mxu0 %v498
        %931 = vmatprep.subr.mxu0 0.0
        %932 = vmatpush1.msra.mxu0 %v499
        %933 = vmatprep.subr.mxu0 0.0
        %934 = vmatpush1.msra.mxu0 %v500
        %935 = vmatprep.subr.mxu0 0.0
        %936 = vmatpush1.msra.mxu0 %v501
        %937 = vmatprep.subr.mxu0 0.0
        %938 = vmatpush1.msra.mxu0 %v502
        %939 = vmatprep.subr.mxu0 0.0
        %940 = vmatpush1.msra.mxu0 %v503
        %941 = vmatprep.subr.mxu0 0.0
        %942 = vmatpush1.msra.mxu0 0.0
        %943 = vmatprep.subr.mxu0 0.0
        %944 = vmatpush1.msra.mxu0 0.0
        %945 = vmatprep.subr.mxu0 0.0
        %946 = vmatpush1.msra.mxu0 0.0
        %947 = vmatprep.subr.mxu0 0.0
        %948 = vmatpush1.msra.mxu0 0.0
        %949 = vmatprep.subr.mxu0 0.0
        %950 = vmatpush1.msra.mxu0 0.0
        %951 = vmatprep.subr.mxu0 0.0
        %952 = vmatpush1.msra.mxu0 0.0
        %953 = vmatprep.subr.mxu0 0.0
        %954 = vmatpush1.msra.mxu0 0.0
        %955 = vmatprep.subr.mxu0 0.0
        %956 = vmatpush1.msra.mxu0 0.0
        %957 = vmatprep.subr.mxu0 0.0
        %958 = vmatpush1.msra.mxu0 0.0
        %959 = vmatprep.subr.mxu0 0.0
        %960 = vmatpush1.msra.mxu0 0.0
        %961 = vmatprep.subr.mxu0 0.0
        %962 = vmatpush1.msra.mxu0 0.0
        %963 = vmatprep.subr.mxu0 0.0
        %964 = vmatpush1.msra.mxu0 0.0
        %965 = vmatprep.subr.mxu0 0.0
        %966 = vmatpush1.msra.mxu0 0.0
        %967 = vmatprep.subr.mxu0 0.0
        %968 = vmatpush1.msra.mxu0 0.0
        %969 = vmatprep.subr.mxu0 0.0
        %970 = vmatpush1.msra.mxu0 0.0
        %971 = vmatprep.subr.mxu0 0.0
        %972 = vmatpush1.msra.mxu0 0.0
        %973 = vmatprep.mubr.f32.mxu0 0.0
        %974 = vmatmul.mubr.f32.gmra.mrb[0].mxu0 %v908
        %v975 = vpop.f32.mrb[0].mxu0
        %v976 = vadd.f32 %v516, %v975
        %v977 = vpop.f32.mrb[0].mxu0
        %978 = vdwg.mxu0
        %v979 = vtanh.pop %v976
        %s980 = scalar_lea.vmem %s451, 8 [#allocation3]
        %981 = vst.msk [vmem:[%s980] sm:$0xff] %vm534, %v979
        %s982 = scalar_lea.vmem %s416, 16 [#allocation2]
        %v983 = vld [vmem:[%s982] sm:$0xff]
        %v985 = vsel %vm534, %v983, 0
        %987 = vmatprep.subr.mxu0 0.0
        %988 = vmatpush1.msra.mxu0 %v540
        %989 = vmatprep.subr.mxu0 0.0
        %990 = vmatpush1.msra.mxu0 0.0
        %991 = vmatprep.subr.mxu0 0.0
        %992 = vmatpush1.msra.mxu0 0.0
        %993 = vmatprep.subr.mxu0 0.0
        %994 = vmatpush1.msra.mxu0 0.0
        %995 = vmatprep.subr.mxu0 0.0
        %996 = vmatpush1.msra.mxu0 0.0
        %997 = vmatprep.subr.mxu0 0.0
        %998 = vmatpush1.msra.mxu0 0.0
        %999 = vmatprep.subr.mxu0 0.0
        %1000 = vmatpush1.msra.mxu0 0.0
        %1001 = vmatprep.subr.mxu0 0.0
        %1002 = vmatpush1.msra.mxu0 0.0
        %1003 = vmatprep.subr.mxu0 0.0
        %1004 = vmatpush1.msra.mxu0 0.0
        %1005 = vmatprep.subr.mxu0 0.0
        %1006 = vmatpush1.msra.mxu0 0.0
        %1007 = vmatprep.subr.mxu0 0.0
        %1008 = vmatpush1.msra.mxu0 0.0
        %1009 = vmatprep.subr.mxu0 0.0
        %1010 = vmatpush1.msra.mxu0 0.0
        %1011 = vmatprep.subr.mxu0 0.0
        %1012 = vmatpush1.msra.mxu0 0.0
        %1013 = vmatprep.subr.mxu0 0.0
        %1014 = vmatpush1.msra.mxu0 0.0
        %1015 = vmatprep.subr.mxu0 0.0
        %1016 = vmatpush1.msra.mxu0 0.0
        %1017 = vmatprep.subr.mxu0 0.0
        %1018 = vmatpush1.msra.mxu0 0.0
        %1019 = vmatprep.subr.mxu0 0.0
        %1020 = vmatpush1.msra.mxu0 0.0
        %1021 = vmatprep.subr.mxu0 0.0
        %1022 = vmatpush1.msra.mxu0 0.0
        %1023 = vmatprep.subr.mxu0 0.0
        %1024 = vmatpush1.msra.mxu0 0.0
        %1025 = vmatprep.subr.mxu0 0.0
        %1026 = vmatpush1.msra.mxu0 0.0
        %1027 = vmatprep.subr.mxu0 0.0
        %1028 = vmatpush1.msra.mxu0 0.0
        %1029 = vmatprep.subr.mxu0 0.0
        %1030 = vmatpush1.msra.mxu0 0.0
        %1031 = vmatprep.subr.mxu0 0.0
        %1032 = vmatpush1.msra.mxu0 0.0
        %1033 = vmatprep.subr.mxu0 0.0
        %1034 = vmatpush1.msra.mxu0 0.0
        %1035 = vmatprep.subr.mxu0 0.0
        %1036 = vmatpush1.msra.mxu0 0.0
        %1037 = vmatprep.subr.mxu0 0.0
        %1038 = vmatpush1.msra.mxu0 0.0
        %1039 = vmatprep.subr.mxu0 0.0
        %1040 = vmatpush1.msra.mxu0 0.0
        %1041 = vmatprep.subr.mxu0 0.0
        %1042 = vmatpush1.msra.mxu0 0.0
        %1043 = vmatprep.subr.mxu0 0.0
        %1044 = vmatpush1.msra.mxu0 0.0
        %1045 = vmatprep.subr.mxu0 0.0
        %1046 = vmatpush1.msra.mxu0 0.0
        %1047 = vmatprep.subr.mxu0 0.0
        %1048 = vmatpush1.msra.mxu0 0.0
        %1049 = vmatprep.subr.mxu0 0.0
        %1050 = vmatpush1.msra.mxu0 0.0
        %1051 = vmatprep.mubr.f32.mxu0 0.0
        %1052 = vmatmul.mubr.f32.gmra.mrb[0].mxu0 %v985
        %v1053 = vpop.f32.mrb[0].mxu0
        %v1054 = vadd.f32 0.0, %v1053
        %v1055 = vpop.f32.mrb[0].mxu0
        %1056 = vdwg.mxu0
        %1057 = vmatprep.subr.mxu0 0.0
        %1058 = vmatpush1.msra.mxu0 %v471
        %1059 = vmatprep.subr.mxu0 0.0
        %1060 = vmatpush1.msra.mxu0 %v472
        %1061 = vmatprep.subr.mxu0 0.0
        %1062 = vmatpush1.msra.mxu0 %v473
        %1063 = vmatprep.subr.mxu0 0.0
        %1064 = vmatpush1.msra.mxu0 %v474
        %1065 = vmatprep.subr.mxu0 0.0
        %1066 = vmatpush1.msra.mxu0 %v475
        %1067 = vmatprep.subr.mxu0 0.0
        %1068 = vmatpush1.msra.mxu0 %v476
        %1069 = vmatprep.subr.mxu0 0.0
        %1070 = vmatpush1.msra.mxu0 %v477
        %1071 = vmatprep.subr.mxu0 0.0
        %1072 = vmatpush1.msra.mxu0 %v478
        %1073 = vmatprep.subr.mxu0 0.0
        %1074 = vmatpush1.msra.mxu0 %v479
        %1075 = vmatprep.subr.mxu0 0.0
        %1076 = vmatpush1.msra.mxu0 %v480
        %1077 = vmatprep.subr.mxu0 0.0
        %1078 = vmatpush1.msra.mxu0 %v481
        %1079 = vmatprep.subr.mxu0 0.0
        %1080 = vmatpush1.msra.mxu0 %v482
        %1081 = vmatprep.subr.mxu0 0.0
        %1082 = vmatpush1.msra.mxu0 %v483
        %1083 = vmatprep.subr.mxu0 0.0
        %1084 = vmatpush1.msra.mxu0 %v484
        %1085 = vmatprep.subr.mxu0 0.0
        %1086 = vmatpush1.msra.mxu0 %v485
        %1087 = vmatprep.subr.mxu0 0.0
        %1088 = vmatpush1.msra.mxu0 %v486
        %1089 = vmatprep.subr.mxu0 0.0
        %1090 = vmatpush1.msra.mxu0 0.0
        %1091 = vmatprep.subr.mxu0 0.0
        %1092 = vmatpush1.msra.mxu0 0.0
        %1093 = vmatprep.subr.mxu0 0.0
        %1094 = vmatpush1.msra.mxu0 0.0
        %1095 = vmatprep.subr.mxu0 0.0
        %1096 = vmatpush1.msra.mxu0 0.0
        %1097 = vmatprep.subr.mxu0 0.0
        %1098 = vmatpush1.msra.mxu0 0.0
        %1099 = vmatprep.subr.mxu0 0.0
        %1100 = vmatpush1.msra.mxu0 0.0
        %1101 = vmatprep.subr.mxu0 0.0
        %1102 = vmatpush1.msra.mxu0 0.0
        %1103 = vmatprep.subr.mxu0 0.0
        %1104 = vmatpush1.msra.mxu0 0.0
        %1105 = vmatprep.subr.mxu0 0.0
        %1106 = vmatpush1.msra.mxu0 0.0
        %1107 = vmatprep.subr.mxu0 0.0
        %1108 = vmatpush1.msra.mxu0 0.0
        %1109 = vmatprep.subr.mxu0 0.0
        %1110 = vmatpush1.msra.mxu0 0.0
        %1111 = vmatprep.subr.mxu0 0.0
        %1112 = vmatpush1.msra.mxu0 0.0
        %1113 = vmatprep.subr.mxu0 0.0
        %1114 = vmatpush1.msra.mxu0 0.0
        %1115 = vmatprep.subr.mxu0 0.0
        %1116 = vmatpush1.msra.mxu0 0.0
        %1117 = vmatprep.subr.mxu0 0.0
        %1118 = vmatpush1.msra.mxu0 0.0
        %1119 = vmatprep.subr.mxu0 0.0
        %1120 = vmatpush1.msra.mxu0 0.0
        %1121 = vmatprep.mubr.f32.mxu0 0.0
        %1122 = vmatmul.mubr.f32.gmra.mrb[0].mxu0 %v908
        %v1123 = vpop.f32.mrb[0].mxu0
        %v1124 = vadd.f32 %v1054, %v1123
        %v1125 = vpop.f32.mrb[0].mxu0
        %1126 = vdwg.mxu0
        %v1127 = vadd.f32 %v1124, %v509
        %v1128 = vmul.f32 %v523, %v908
        %v1129 = vmul.f32 %v530, %v1127
        %v1130 = vadd.f32 %v1128, %v1129
        %v1131 = vtanh.pop %v1130
        %1132 = vmatprep.subr.mxu0 0.0
        %1133 = vmatpush1.msra.mxu0 %v488
        %1134 = vmatprep.subr.mxu0 0.0
        %1135 = vmatpush1.msra.mxu0 %v489
        %1136 = vmatprep.subr.mxu0 0.0
        %1137 = vmatpush1.msra.mxu0 %v490
        %1138 = vmatprep.subr.mxu0 0.0
        %1139 = vmatpush1.msra.mxu0 %v491
        %1140 = vmatprep.subr.mxu0 0.0
        %1141 = vmatpush1.msra.mxu0 %v492
        %1142 = vmatprep.subr.mxu0 0.0
        %1143 = vmatpush1.msra.mxu0 %v493
        %1144 = vmatprep.subr.mxu0 0.0
        %1145 = vmatpush1.msra.mxu0 %v494
        %1146 = vmatprep.subr.mxu0 0.0
        %1147 = vmatpush1.msra.mxu0 %v495
        %1148 = vmatprep.subr.mxu0 0.0
        %1149 = vmatpush1.msra.mxu0 %v496
        %1150 = vmatprep.subr.mxu0 0.0
        %1151 = vmatpush1.msra.mxu0 %v497
        %1152 = vmatprep.subr.mxu0 0.0
        %1153 = vmatpush1.msra.mxu0 %v498
        %1154 = vmatprep.subr.mxu0 0.0
        %1155 = vmatpush1.msra.mxu0 %v499
        %1156 = vmatprep.subr.mxu0 0.0
        %1157 = vmatpush1.msra.mxu0 %v500
        %1158 = vmatprep.subr.mxu0 0.0
        %1159 = vmatpush1.msra.mxu0 %v501
        %1160 = vmatprep.subr.mxu0 0.0
        %1161 = vmatpush1.msra.mxu0 %v502
        %1162 = vmatprep.subr.mxu0 0.0
        %1163 = vmatpush1.msra.mxu0 %v503
        %1164 = vmatprep.subr.mxu0 0.0
        %1165 = vmatpush1.msra.mxu0 0.0
        %1166 = vmatprep.subr.mxu0 0.0
        %1167 = vmatpush1.msra.mxu0 0.0
        %1168 = vmatprep.subr.mxu0 0.0
        %1169 = vmatpush1.msra.mxu0 0.0
        %1170 = vmatprep.subr.mxu0 0.0
        %1171 = vmatpush1.msra.mxu0 0.0
        %1172 = vmatprep.subr.mxu0 0.0
        %1173 = vmatpush1.msra.mxu0 0.0
        %1174 = vmatprep.subr.mxu0 0.0
        %1175 = vmatpush1.msra.mxu0 0.0
        %1176 = vmatprep.subr.mxu0 0.0
        %1177 = vmatpush1.msra.mxu0 0.0
        %1178 = vmatprep.subr.mxu0 0.0
        %1179 = vmatpush1.msra.mxu0 0.0
        %1180 = vmatprep.subr.mxu0 0.0
        %1181 = vmatpush1.msra.mxu0 0.0
        %1182 = vmatprep.subr.mxu0 0.0
        %1183 = vmatpush1.msra.mxu0 0.0
        %1184 = vmatprep.subr.mxu0 0.0
        %1185 = vmatpush1.msra.mxu0 0.0
        %1186 = vmatprep.subr.mxu0 0.0
        %1187 = vmatpush1.msra.mxu0 0.0
        %1188 = vmatprep.subr.mxu0 0.0
        %1189 = vmatpush1.msra.mxu0 0.0
        %1190 = vmatprep.subr.mxu0 0.0
        %1191 = vmatpush1.msra.mxu0 0.0
        %1192 = vmatprep.subr.mxu0 0.0
        %1193 = vmatpush1.msra.mxu0 0.0
        %1194 = vmatprep.subr.mxu0 0.0
        %1195 = vmatpush1.msra.mxu0 0.0
        %1196 = vmatprep.mubr.f32.mxu0 0.0
        %1197 = vmatmul.mubr.f32.gmra.mrb[0].mxu0 %v1131
        %v1198 = vpop.f32.mrb[0].mxu0
        %v1199 = vadd.f32 %v516, %v1198
        %v1200 = vpop.f32.mrb[0].mxu0
        %1201 = vdwg.mxu0
        %v1202 = vtanh.pop %v1199
        %s1203 = scalar_lea.vmem %s451, 16 [#allocation3]
        %1204 = vst.msk [vmem:[%s1203] sm:$0xff] %vm534, %v1202
        %s1205 = scalar_lea.vmem %s416, 24 [#allocation2]
        %v1206 = vld [vmem:[%s1205] sm:$0xff]
        %v1208 = vsel %vm534, %v1206, 0
        %1210 = vmatprep.subr.mxu0 0.0
        %1211 = vmatpush1.msra.mxu0 %v540
        %1212 = vmatprep.subr.mxu0 0.0
        %1213 = vmatpush1.msra.mxu0 0.0
        %1214 = vmatprep.subr.mxu0 0.0
        %1215 = vmatpush1.msra.mxu0 0.0
        %1216 = vmatprep.subr.mxu0 0.0
        %1217 = vmatpush1.msra.mxu0 0.0
        %1218 = vmatprep.subr.mxu0 0.0
        %1219 = vmatpush1.msra.mxu0 0.0
        %1220 = vmatprep.subr.mxu0 0.0
        %1221 = vmatpush1.msra.mxu0 0.0
        %1222 = vmatprep.subr.mxu0 0.0
        %1223 = vmatpush1.msra.mxu0 0.0
        %1224 = vmatprep.subr.mxu0 0.0
        %1225 = vmatpush1.msra.mxu0 0.0
        %1226 = vmatprep.subr.mxu0 0.0
        %1227 = vmatpush1.msra.mxu0 0.0
        %1228 = vmatprep.subr.mxu0 0.0
        %1229 = vmatpush1.msra.mxu0 0.0
        %1230 = vmatprep.subr.mxu0 0.0
        %1231 = vmatpush1.msra.mxu0 0.0
        %1232 = vmatprep.subr.mxu0 0.0
        %1233 = vmatpush1.msra.mxu0 0.0
        %1234 = vmatprep.subr.mxu0 0.0
        %1235 = vmatpush1.msra.mxu0 0.0
        %1236 = vmatprep.subr.mxu0 0.0
        %1237 = vmatpush1.msra.mxu0 0.0
        %1238 = vmatprep.subr.mxu0 0.0
        %1239 = vmatpush1.msra.mxu0 0.0
        %1240 = vmatprep.subr.mxu0 0.0
        %1241 = vmatpush1.msra.mxu0 0.0
        %1242 = vmatprep.subr.mxu0 0.0
        %1243 = vmatpush1.msra.mxu0 0.0
        %1244 = vmatprep.subr.mxu0 0.0
        %1245 = vmatpush1.msra.mxu0 0.0
        %1246 = vmatprep.subr.mxu0 0.0
        %1247 = vmatpush1.msra.mxu0 0.0
        %1248 = vmatprep.subr.mxu0 0.0
        %1249 = vmatpush1.msra.mxu0 0.0
        %1250 = vmatprep.subr.mxu0 0.0
        %1251 = vmatpush1.msra.mxu0 0.0
        %1252 = vmatprep.subr.mxu0 0.0
        %1253 = vmatpush1.msra.mxu0 0.0
        %1254 = vmatprep.subr.mxu0 0.0
        %1255 = vmatpush1.msra.mxu0 0.0
        %1256 = vmatprep.subr.mxu0 0.0
        %1257 = vmatpush1.msra.mxu0 0.0
        %1258 = vmatprep.subr.mxu0 0.0
        %1259 = vmatpush1.msra.mxu0 0.0
        %1260 = vmatprep.subr.mxu0 0.0
        %1261 = vmatpush1.msra.mxu0 0.0
        %1262 = vmatprep.subr.mxu0 0.0
        %1263 = vmatpush1.msra.mxu0 0.0
        %1264 = vmatprep.subr.mxu0 0.0
        %1265 = vmatpush1.msra.mxu0 0.0
        %1266 = vmatprep.subr.mxu0 0.0
        %1267 = vmatpush1.msra.mxu0 0.0
        %1268 = vmatprep.subr.mxu0 0.0
        %1269 = vmatpush1.msra.mxu0 0.0
        %1270 = vmatprep.subr.mxu0 0.0
        %1271 = vmatpush1.msra.mxu0 0.0
        %1272 = vmatprep.subr.mxu0 0.0
        %1273 = vmatpush1.msra.mxu0 0.0
        %1274 = vmatprep.mubr.f32.mxu0 0.0
        %1275 = vmatmul.mubr.f32.gmra.mrb[0].mxu0 %v1208
        %v1276 = vpop.f32.mrb[0].mxu0
        %v1277 = vadd.f32 0.0, %v1276
        %v1278 = vpop.f32.mrb[0].mxu0
        %1279 = vdwg.mxu0
        %1280 = vmatprep.subr.mxu0 0.0
        %1281 = vmatpush1.msra.mxu0 %v471
        %1282 = vmatprep.subr.mxu0 0.0
        %1283 = vmatpush1.msra.mxu0 %v472
        %1284 = vmatprep.subr.mxu0 0.0
        %1285 = vmatpush1.msra.mxu0 %v473
        %1286 = vmatprep.subr.mxu0 0.0
        %1287 = vmatpush1.msra.mxu0 %v474
        %1288 = vmatprep.subr.mxu0 0.0
        %1289 = vmatpush1.msra.mxu0 %v475
        %1290 = vmatprep.subr.mxu0 0.0
        %1291 = vmatpush1.msra.mxu0 %v476
        %1292 = vmatprep.subr.mxu0 0.0
        %1293 = vmatpush1.msra.mxu0 %v477
        %1294 = vmatprep.subr.mxu0 0.0
        %1295 = vmatpush1.msra.mxu0 %v478
        %1296 = vmatprep.subr.mxu0 0.0
        %1297 = vmatpush1.msra.mxu0 %v479
        %1298 = vmatprep.subr.mxu0 0.0
        %1299 = vmatpush1.msra.mxu0 %v480
        %1300 = vmatprep.subr.mxu0 0.0
        %1301 = vmatpush1.msra.mxu0 %v481
        %1302 = vmatprep.subr.mxu0 0.0
        %1303 = vmatpush1.msra.mxu0 %v482
        %1304 = vmatprep.subr.mxu0 0.0
        %1305 = vmatpush1.msra.mxu0 %v483
        %1306 = vmatprep.subr.mxu0 0.0
        %1307 = vmatpush1.msra.mxu0 %v484
        %1308 = vmatprep.subr.mxu0 0.0
        %1309 = vmatpush1.msra.mxu0 %v485
        %1310 = vmatprep.subr.mxu0 0.0
        %1311 = vmatpush1.msra.mxu0 %v486
        %1312 = vmatprep.subr.mxu0 0.0
        %1313 = vmatpush1.msra.mxu0 0.0
        %1314 = vmatprep.subr.mxu0 0.0
        %1315 = vmatpush1.msra.mxu0 0.0
        %1316 = vmatprep.subr.mxu0 0.0
        %1317 = vmatpush1.msra.mxu0 0.0
        %1318 = vmatprep.subr.mxu0 0.0
        %1319 = vmatpush1.msra.mxu0 0.0
        %1320 = vmatprep.subr.mxu0 0.0
        %1321 = vmatpush1.msra.mxu0 0.0
        %1322 = vmatprep.subr.mxu0 0.0
        %1323 = vmatpush1.msra.mxu0 0.0
        %1324 = vmatprep.subr.mxu0 0.0
        %1325 = vmatpush1.msra.mxu0 0.0
        %1326 = vmatprep.subr.mxu0 0.0
        %1327 = vmatpush1.msra.mxu0 0.0
        %1328 = vmatprep.subr.mxu0 0.0
        %1329 = vmatpush1.msra.mxu0 0.0
        %1330 = vmatprep.subr.mxu0 0.0
        %1331 = vmatpush1.msra.mxu0 0.0
        %1332 = vmatprep.subr.mxu0 0.0
        %1333 = vmatpush1.msra.mxu0 0.0
        %1334 = vmatprep.subr.mxu0 0.0
        %1335 = vmatpush1.msra.mxu0 0.0
        %1336 = vmatprep.subr.mxu0 0.0
        %1337 = vmatpush1.msra.mxu0 0.0
        %1338 = vmatprep.subr.mxu0 0.0
        %1339 = vmatpush1.msra.mxu0 0.0
        %1340 = vmatprep.subr.mxu0 0.0
        %1341 = vmatpush1.msra.mxu0 0.0
        %1342 = vmatprep.subr.mxu0 0.0
        %1343 = vmatpush1.msra.mxu0 0.0
        %1344 = vmatprep.mubr.f32.mxu0 0.0
        %1345 = vmatmul.mubr.f32.gmra.mrb[0].mxu0 %v1131
        %v1346 = vpop.f32.mrb[0].mxu0
        %v1347 = vadd.f32 %v1277, %v1346
        %v1348 = vpop.f32.mrb[0].mxu0
        %1349 = vdwg.mxu0
        %v1350 = vadd.f32 %v1347, %v509
        %v1351 = vmul.f32 %v523, %v1131
        %v1352 = vmul.f32 %v530, %v1350
        %v1353 = vadd.f32 %v1351, %v1352
        %v1354 = vtanh.pop %v1353
        %1355 = vmatprep.subr.mxu0 0.0
        %1356 = vmatpush1.msra.mxu0 %v488
        %1357 = vmatprep.subr.mxu0 0.0
        %1358 = vmatpush1.msra.mxu0 %v489
        %1359 = vmatprep.subr.mxu0 0.0
        %1360 = vmatpush1.msra.mxu0 %v490
        %1361 = vmatprep.subr.mxu0 0.0
        %1362 = vmatpush1.msra.mxu0 %v491
        %1363 = vmatprep.subr.mxu0 0.0
        %1364 = vmatpush1.msra.mxu0 %v492
        %1365 = vmatprep.subr.mxu0 0.0
        %1366 = vmatpush1.msra.mxu0 %v493
        %1367 = vmatprep.subr.mxu0 0.0
        %1368 = vmatpush1.msra.mxu0 %v494
        %1369 = vmatprep.subr.mxu0 0.0
        %1370 = vmatpush1.msra.mxu0 %v495
        %1371 = vmatprep.subr.mxu0 0.0
        %1372 = vmatpush1.msra.mxu0 %v496
        %1373 = vmatprep.subr.mxu0 0.0
        %1374 = vmatpush1.msra.mxu0 %v497
        %1375 = vmatprep.subr.mxu0 0.0
        %1376 = vmatpush1.msra.mxu0 %v498
        %1377 = vmatprep.subr.mxu0 0.0
        %1378 = vmatpush1.msra.mxu0 %v499
        %1379 = vmatprep.subr.mxu0 0.0
        %1380 = vmatpush1.msra.mxu0 %v500
        %1381 = vmatprep.subr.mxu0 0.0
        %1382 = vmatpush1.msra.mxu0 %v501
        %1383 = vmatprep.subr.mxu0 0.0
        %1384 = vmatpush1.msra.mxu0 %v502
        %1385 = vmatprep.subr.mxu0 0.0
        %1386 = vmatpush1.msra.mxu0 %v503
        %1387 = vmatprep.subr.mxu0 0.0
        %1388 = vmatpush1.msra.mxu0 0.0
        %1389 = vmatprep.subr.mxu0 0.0
        %1390 = vmatpush1.msra.mxu0 0.0
        %1391 = vmatprep.subr.mxu0 0.0
        %1392 = vmatpush1.msra.mxu0 0.0
        %1393 = vmatprep.subr.mxu0 0.0
        %1394 = vmatpush1.msra.mxu0 0.0
        %1395 = vmatprep.subr.mxu0 0.0
        %1396 = vmatpush1.msra.mxu0 0.0
        %1397 = vmatprep.subr.mxu0 0.0
        %1398 = vmatpush1.msra.mxu0 0.0
        %1399 = vmatprep.subr.mxu0 0.0
        %1400 = vmatpush1.msra.mxu0 0.0
        %1401 = vmatprep.subr.mxu0 0.0
        %1402 = vmatpush1.msra.mxu0 0.0
        %1403 = vmatprep.subr.mxu0 0.0
        %1404 = vmatpush1.msra.mxu0 0.0
        %1405 = vmatprep.subr.mxu0 0.0
        %1406 = vmatpush1.msra.mxu0 0.0
        %1407 = vmatprep.subr.mxu0 0.0
        %1408 = vmatpush1.msra.mxu0 0.0
        %1409 = vmatprep.subr.mxu0 0.0
        %1410 = vmatpush1.msra.mxu0 0.0
        %1411 = vmatprep.subr.mxu0 0.0
        %1412 = vmatpush1.msra.mxu0 0.0
        %1413 = vmatprep.subr.mxu0 0.0
        %1414 = vmatpush1.msra.mxu0 0.0
        %1415 = vmatprep.subr.mxu0 0.0
        %1416 = vmatpush1.msra.mxu0 0.0
        %1417 = vmatprep.subr.mxu0 0.0
        %1418 = vmatpush1.msra.mxu0 0.0
        %1419 = vmatprep.mubr.f32.mxu0 0.0
        %1420 = vmatmul.mubr.f32.gmra.mrb[0].mxu0 %v1354
        %v1421 = vpop.f32.mrb[0].mxu0
        %v1422 = vadd.f32 %v516, %v1421
        %v1423 = vpop.f32.mrb[0].mxu0
        %1424 = vdwg.mxu0
        %v1425 = vtanh.pop %v1422
        %s1426 = scalar_lea.vmem %s451, 24 [#allocation3]
        %1427 = vst.msk [vmem:[%s1426] sm:$0xff] %vm534, %v1425
        %s1428 = scalar_lea.vmem %s416, 32 [#allocation2]
        %v1429 = vld [vmem:[%s1428] sm:$0xff]
        %v1431 = vsel %vm534, %v1429, 0
        %1433 = vmatprep.subr.mxu0 0.0
        %1434 = vmatpush1.msra.mxu0 %v540
        %1435 = vmatprep.subr.mxu0 0.0
        %1436 = vmatpush1.msra.mxu0 0.0
        %1437 = vmatprep.subr.mxu0 0.0
        %1438 = vmatpush1.msra.mxu0 0.0
        %1439 = vmatprep.subr.mxu0 0.0
        %1440 = vmatpush1.msra.mxu0 0.0
        %1441 = vmatprep.subr.mxu0 0.0
        %1442 = vmatpush1.msra.mxu0 0.0
        %1443 = vmatprep.subr.mxu0 0.0
        %1444 = vmatpush1.msra.mxu0 0.0
        %1445 = vmatprep.subr.mxu0 0.0
        %1446 = vmatpush1.msra.mxu0 0.0
        %1447 = vmatprep.subr.mxu0 0.0
        %1448 = vmatpush1.msra.mxu0 0.0
        %1449 = vmatprep.subr.mxu0 0.0
        %1450 = vmatpush1.msra.mxu0 0.0
        %1451 = vmatprep.subr.mxu0 0.0
        %1452 = vmatpush1.msra.mxu0 0.0
        %1453 = vmatprep.subr.mxu0 0.0
        %1454 = vmatpush1.msra.mxu0 0.0
        %1455 = vmatprep.subr.mxu0 0.0
        %1456 = vmatpush1.msra.mxu0 0.0
        %1457 = vmatprep.subr.mxu0 0.0
        %1458 = vmatpush1.msra.mxu0 0.0
        %1459 = vmatprep.subr.mxu0 0.0
        %1460 = vmatpush1.msra.mxu0 0.0
        %1461 = vmatprep.subr.mxu0 0.0
        %1462 = vmatpush1.msra.mxu0 0.0
        %1463 = vmatprep.subr.mxu0 0.0
        %1464 = vmatpush1.msra.mxu0 0.0
        %1465 = vmatprep.subr.mxu0 0.0
        %1466 = vmatpush1.msra.mxu0 0.0
        %1467 = vmatprep.subr.mxu0 0.0
        %1468 = vmatpush1.msra.mxu0 0.0
        %1469 = vmatprep.subr.mxu0 0.0
        %1470 = vmatpush1.msra.mxu0 0.0
        %1471 = vmatprep.subr.mxu0 0.0
        %1472 = vmatpush1.msra.mxu0 0.0
        %1473 = vmatprep.subr.mxu0 0.0
        %1474 = vmatpush1.msra.mxu0 0.0
        %1475 = vmatprep.subr.mxu0 0.0
        %1476 = vmatpush1.msra.mxu0 0.0
        %1477 = vmatprep.subr.mxu0 0.0
        %1478 = vmatpush1.msra.mxu0 0.0
        %1479 = vmatprep.subr.mxu0 0.0
        %1480 = vmatpush1.msra.mxu0 0.0
        %1481 = vmatprep.subr.mxu0 0.0
        %1482 = vmatpush1.msra.mxu0 0.0
        %1483 = vmatprep.subr.mxu0 0.0
        %1484 = vmatpush1.msra.mxu0 0.0
        %1485 = vmatprep.subr.mxu0 0.0
        %1486 = vmatpush1.msra.mxu0 0.0
        %1487 = vmatprep.subr.mxu0 0.0
        %1488 = vmatpush1.msra.mxu0 0.0
        %1489 = vmatprep.subr.mxu0 0.0
        %1490 = vmatpush1.msra.mxu0 0.0
        %1491 = vmatprep.subr.mxu0 0.0
        %1492 = vmatpush1.msra.mxu0 0.0
        %1493 = vmatprep.subr.mxu0 0.0
        %1494 = vmatpush1.msra.mxu0 0.0
        %1495 = vmatprep.subr.mxu0 0.0
        %1496 = vmatpush1.msra.mxu0 0.0
        %1497 = vmatprep.mubr.f32.mxu0 0.0
        %1498 = vmatmul.mubr.f32.gmra.mrb[0].mxu0 %v1431
        %v1499 = vpop.f32.mrb[0].mxu0
        %v1500 = vadd.f32 0.0, %v1499
        %v1501 = vpop.f32.mrb[0].mxu0
        %1502 = vdwg.mxu0
        %1503 = vmatprep.subr.mxu0 0.0
        %1504 = vmatpush1.msra.mxu0 %v471
        %1505 = vmatprep.subr.mxu0 0.0
        %1506 = vmatpush1.msra.mxu0 %v472
        %1507 = vmatprep.subr.mxu0 0.0
        %1508 = vmatpush1.msra.mxu0 %v473
        %1509 = vmatprep.subr.mxu0 0.0
        %1510 = vmatpush1.msra.mxu0 %v474
        %1511 = vmatprep.subr.mxu0 0.0
        %1512 = vmatpush1.msra.mxu0 %v475
        %1513 = vmatprep.subr.mxu0 0.0
        %1514 = vmatpush1.msra.mxu0 %v476
        %1515 = vmatprep.subr.mxu0 0.0
        %1516 = vmatpush1.msra.mxu0 %v477
        %1517 = vmatprep.subr.mxu0 0.0
        %1518 = vmatpush1.msra.mxu0 %v478
        %1519 = vmatprep.subr.mxu0 0.0
        %1520 = vmatpush1.msra.mxu0 %v479
        %1521 = vmatprep.subr.mxu0 0.0
        %1522 = vmatpush1.msra.mxu0 %v480
        %1523 = vmatprep.subr.mxu0 0.0
        %1524 = vmatpush1.msra.mxu0 %v481
        %1525 = vmatprep.subr.mxu0 0.0
        %1526 = vmatpush1.msra.mxu0 %v482
        %1527 = vmatprep.subr.mxu0 0.0
        %1528 = vmatpush1.msra.mxu0 %v483
        %1529 = vmatprep.subr.mxu0 0.0
        %1530 = vmatpush1.msra.mxu0 %v484
        %1531 = vmatprep.subr.mxu0 0.0
        %1532 = vmatpush1.msra.mxu0 %v485
        %1533 = vmatprep.subr.mxu0 0.0
        %1534 = vmatpush1.msra.mxu0 %v486
        %1535 = vmatprep.subr.mxu0 0.0
        %1536 = vmatpush1.msra.mxu0 0.0
        %1537 = vmatprep.subr.mxu0 0.0
        %1538 = vmatpush1.msra.mxu0 0.0
        %1539 = vmatprep.subr.mxu0 0.0
        %1540 = vmatpush1.msra.mxu0 0.0
        %1541 = vmatprep.subr.mxu0 0.0
        %1542 = vmatpush1.msra.mxu0 0.0
        %1543 = vmatprep.subr.mxu0 0.0
        %1544 = vmatpush1.msra.mxu0 0.0
        %1545 = vmatprep.subr.mxu0 0.0
        %1546 = vmatpush1.msra.mxu0 0.0
        %1547 = vmatprep.subr.mxu0 0.0
        %1548 = vmatpush1.msra.mxu0 0.0
        %1549 = vmatprep.subr.mxu0 0.0
        %1550 = vmatpush1.msra.mxu0 0.0
        %1551 = vmatprep.subr.mxu0 0.0
        %1552 = vmatpush1.msra.mxu0 0.0
        %1553 = vmatprep.subr.mxu0 0.0
        %1554 = vmatpush1.msra.mxu0 0.0
        %1555 = vmatprep.subr.mxu0 0.0
        %1556 = vmatpush1.msra.mxu0 0.0
        %1557 = vmatprep.subr.mxu0 0.0
        %1558 = vmatpush1.msra.mxu0 0.0
        %1559 = vmatprep.subr.mxu0 0.0
        %1560 = vmatpush1.msra.mxu0 0.0
        %1561 = vmatprep.subr.mxu0 0.0
        %1562 = vmatpush1.msra.mxu0 0.0
        %1563 = vmatprep.subr.mxu0 0.0
        %1564 = vmatpush1.msra.mxu0 0.0
        %1565 = vmatprep.subr.mxu0 0.0
        %1566 = vmatpush1.msra.mxu0 0.0
        %1567 = vmatprep.mubr.f32.mxu0 0.0
        %1568 = vmatmul.mubr.f32.gmra.mrb[0].mxu0 %v1354
        %v1569 = vpop.f32.mrb[0].mxu0
        %v1570 = vadd.f32 %v1500, %v1569
        %v1571 = vpop.f32.mrb[0].mxu0
        %1572 = vdwg.mxu0
        %v1573 = vadd.f32 %v1570, %v509
        %v1574 = vmul.f32 %v523, %v1354
        %v1575 = vmul.f32 %v530, %v1573
        %v1576 = vadd.f32 %v1574, %v1575
        %v1577 = vtanh.pop %v1576
        %1578 = vmatprep.subr.mxu0 0.0
        %1579 = vmatpush1.msra.mxu0 %v488
        %1580 = vmatprep.subr.mxu0 0.0
        %1581 = vmatpush1.msra.mxu0 %v489
        %1582 = vmatprep.subr.mxu0 0.0
        %1583 = vmatpush1.msra.mxu0 %v490
        %1584 = vmatprep.subr.mxu0 0.0
        %1585 = vmatpush1.msra.mxu0 %v491
        %1586 = vmatprep.subr.mxu0 0.0
        %1587 = vmatpush1.msra.mxu0 %v492
        %1588 = vmatprep.subr.mxu0 0.0
        %1589 = vmatpush1.msra.mxu0 %v493
        %1590 = vmatprep.subr.mxu0 0.0
        %1591 = vmatpush1.msra.mxu0 %v494
        %1592 = vmatprep.subr.mxu0 0.0
        %1593 = vmatpush1.msra.mxu0 %v495
        %1594 = vmatprep.subr.mxu0 0.0
        %1595 = vmatpush1.msra.mxu0 %v496
        %1596 = vmatprep.subr.mxu0 0.0
        %1597 = vmatpush1.msra.mxu0 %v497
        %1598 = vmatprep.subr.mxu0 0.0
        %1599 = vmatpush1.msra.mxu0 %v498
        %1600 = vmatprep.subr.mxu0 0.0
        %1601 = vmatpush1.msra.mxu0 %v499
        %1602 = vmatprep.subr.mxu0 0.0
        %1603 = vmatpush1.msra.mxu0 %v500
        %1604 = vmatprep.subr.mxu0 0.0
        %1605 = vmatpush1.msra.mxu0 %v501
        %1606 = vmatprep.subr.mxu0 0.0
        %1607 = vmatpush1.msra.mxu0 %v502
        %1608 = vmatprep.subr.mxu0 0.0
        %1609 = vmatpush1.msra.mxu0 %v503
        %1610 = vmatprep.subr.mxu0 0.0
        %1611 = vmatpush1.msra.mxu0 0.0
        %1612 = vmatprep.subr.mxu0 0.0
        %1613 = vmatpush1.msra.mxu0 0.0
        %1614 = vmatprep.subr.mxu0 0.0
        %1615 = vmatpush1.msra.mxu0 0.0
        %1616 = vmatprep.subr.mxu0 0.0
        %1617 = vmatpush1.msra.mxu0 0.0
        %1618 = vmatprep.subr.mxu0 0.0
        %1619 = vmatpush1.msra.mxu0 0.0
        %1620 = vmatprep.subr.mxu0 0.0
        %1621 = vmatpush1.msra.mxu0 0.0
        %1622 = vmatprep.subr.mxu0 0.0
        %1623 = vmatpush1.msra.mxu0 0.0
        %1624 = vmatprep.subr.mxu0 0.0
        %1625 = vmatpush1.msra.mxu0 0.0
        %1626 = vmatprep.subr.mxu0 0.0
        %1627 = vmatpush1.msra.mxu0 0.0
        %1628 = vmatprep.subr.mxu0 0.0
        %1629 = vmatpush1.msra.mxu0 0.0
        %1630 = vmatprep.subr.mxu0 0.0
        %1631 = vmatpush1.msra.mxu0 0.0
        %1632 = vmatprep.subr.mxu0 0.0
        %1633 = vmatpush1.msra.mxu0 0.0
        %1634 = vmatprep.subr.mxu0 0.0
        %1635 = vmatpush1.msra.mxu0 0.0
        %1636 = vmatprep.subr.mxu0 0.0
        %1637 = vmatpush1.msra.mxu0 0.0
        %1638 = vmatprep.subr.mxu0 0.0
        %1639 = vmatpush1.msra.mxu0 0.0
        %1640 = vmatprep.subr.mxu0 0.0
        %1641 = vmatpush1.msra.mxu0 0.0
        %1642 = vmatprep.mubr.f32.mxu0 0.0
        %1643 = vmatmul.mubr.f32.gmra.mrb[0].mxu0 %v1577
        %v1644 = vpop.f32.mrb[0].mxu0
        %v1645 = vadd.f32 %v516, %v1644
        %v1646 = vpop.f32.mrb[0].mxu0
        %1647 = vdwg.mxu0
        %v1648 = vtanh.pop %v1645
        %s1649 = scalar_lea.vmem %s451, 32 [#allocation3]
        %1650 = vst.msk [vmem:[%s1649] sm:$0xff] %vm534, %v1648
        %s1651 = scalar_lea.vmem %s416, 40 [#allocation2]
        %v1652 = vld [vmem:[%s1651] sm:$0xff]
        %v1654 = vsel %vm534, %v1652, 0
        %1656 = vmatprep.subr.mxu0 0.0
        %1657 = vmatpush1.msra.mxu0 %v540
        %1658 = vmatprep.subr.mxu0 0.0
        %1659 = vmatpush1.msra.mxu0 0.0
        %1660 = vmatprep.subr.mxu0 0.0
        %1661 = vmatpush1.msra.mxu0 0.0
        %1662 = vmatprep.subr.mxu0 0.0
        %1663 = vmatpush1.msra.mxu0 0.0
        %1664 = vmatprep.subr.mxu0 0.0
        %1665 = vmatpush1.msra.mxu0 0.0
        %1666 = vmatprep.subr.mxu0 0.0
        %1667 = vmatpush1.msra.mxu0 0.0
        %1668 = vmatprep.subr.mxu0 0.0
        %1669 = vmatpush1.msra.mxu0 0.0
        %1670 = vmatprep.subr.mxu0 0.0
        %1671 = vmatpush1.msra.mxu0 0.0
        %1672 = vmatprep.subr.mxu0 0.0
        %1673 = vmatpush1.msra.mxu0 0.0
        %1674 = vmatprep.subr.mxu0 0.0
        %1675 = vmatpush1.msra.mxu0 0.0
        %1676 = vmatprep.subr.mxu0 0.0
        %1677 = vmatpush1.msra.mxu0 0.0
        %1678 = vmatprep.subr.mxu0 0.0
        %1679 = vmatpush1.msra.mxu0 0.0
        %1680 = vmatprep.subr.mxu0 0.0
        %1681 = vmatpush1.msra.mxu0 0.0
        %1682 = vmatprep.subr.mxu0 0.0
        %1683 = vmatpush1.msra.mxu0 0.0
        %1684 = vmatprep.subr.mxu0 0.0
        %1685 = vmatpush1.msra.mxu0 0.0
        %1686 = vmatprep.subr.mxu0 0.0
        %1687 = vmatpush1.msra.mxu0 0.0
        %1688 = vmatprep.subr.mxu0 0.0
        %1689 = vmatpush1.msra.mxu0 0.0
        %1690 = vmatprep.subr.mxu0 0.0
        %1691 = vmatpush1.msra.mxu0 0.0
        %1692 = vmatprep.subr.mxu0 0.0
        %1693 = vmatpush1.msra.mxu0 0.0
        %1694 = vmatprep.subr.mxu0 0.0
        %1695 = vmatpush1.msra.mxu0 0.0
        %1696 = vmatprep.subr.mxu0 0.0
        %1697 = vmatpush1.msra.mxu0 0.0
        %1698 = vmatprep.subr.mxu0 0.0
        %1699 = vmatpush1.msra.mxu0 0.0
        %1700 = vmatprep.subr.mxu0 0.0
        %1701 = vmatpush1.msra.mxu0 0.0
        %1702 = vmatprep.subr.mxu0 0.0
        %1703 = vmatpush1.msra.mxu0 0.0
        %1704 = vmatprep.subr.mxu0 0.0
        %1705 = vmatpush1.msra.mxu0 0.0
        %1706 = vmatprep.subr.mxu0 0.0
        %1707 = vmatpush1.msra.mxu0 0.0
        %1708 = vmatprep.subr.mxu0 0.0
        %1709 = vmatpush1.msra.mxu0 0.0
        %1710 = vmatprep.subr.mxu0 0.0
        %1711 = vmatpush1.msra.mxu0 0.0
        %1712 = vmatprep.subr.mxu0 0.0
        %1713 = vmatpush1.msra.mxu0 0.0
        %1714 = vmatprep.subr.mxu0 0.0
        %1715 = vmatpush1.msra.mxu0 0.0
        %1716 = vmatprep.subr.mxu0 0.0
        %1717 = vmatpush1.msra.mxu0 0.0
        %1718 = vmatprep.subr.mxu0 0.0
        %1719 = vmatpush1.msra.mxu0 0.0
        %1720 = vmatprep.mubr.f32.mxu0 0.0
        %1721 = vmatmul.mubr.f32.gmra.mrb[0].mxu0 %v1654
        %v1722 = vpop.f32.mrb[0].mxu0
        %v1723 = vadd.f32 0.0, %v1722
        %v1724 = vpop.f32.mrb[0].mxu0
        %1725 = vdwg.mxu0
        %1726 = vmatprep.subr.mxu0 0.0
        %1727 = vmatpush1.msra.mxu0 %v471
        %1728 = vmatprep.subr.mxu0 0.0
        %1729 = vmatpush1.msra.mxu0 %v472
        %1730 = vmatprep.subr.mxu0 0.0
        %1731 = vmatpush1.msra.mxu0 %v473
        %1732 = vmatprep.subr.mxu0 0.0
        %1733 = vmatpush1.msra.mxu0 %v474
        %1734 = vmatprep.subr.mxu0 0.0
        %1735 = vmatpush1.msra.mxu0 %v475
        %1736 = vmatprep.subr.mxu0 0.0
        %1737 = vmatpush1.msra.mxu0 %v476
        %1738 = vmatprep.subr.mxu0 0.0
        %1739 = vmatpush1.msra.mxu0 %v477
        %1740 = vmatprep.subr.mxu0 0.0
        %1741 = vmatpush1.msra.mxu0 %v478
        %1742 = vmatprep.subr.mxu0 0.0
        %1743 = vmatpush1.msra.mxu0 %v479
        %1744 = vmatprep.subr.mxu0 0.0
        %1745 = vmatpush1.msra.mxu0 %v480
        %1746 = vmatprep.subr.mxu0 0.0
        %1747 = vmatpush1.msra.mxu0 %v481
        %1748 = vmatprep.subr.mxu0 0.0
        %1749 = vmatpush1.msra.mxu0 %v482
        %1750 = vmatprep.subr.mxu0 0.0
        %1751 = vmatpush1.msra.mxu0 %v483
        %1752 = vmatprep.subr.mxu0 0.0
        %1753 = vmatpush1.msra.mxu0 %v484
        %1754 = vmatprep.subr.mxu0 0.0
        %1755 = vmatpush1.msra.mxu0 %v485
        %1756 = vmatprep.subr.mxu0 0.0
        %1757 = vmatpush1.msra.mxu0 %v486
        %1758 = vmatprep.subr.mxu0 0.0
        %1759 = vmatpush1.msra.mxu0 0.0
        %1760 = vmatprep.subr.mxu0 0.0
        %1761 = vmatpush1.msra.mxu0 0.0
        %1762 = vmatprep.subr.mxu0 0.0
        %1763 = vmatpush1.msra.mxu0 0.0
        %1764 = vmatprep.subr.mxu0 0.0
        %1765 = vmatpush1.msra.mxu0 0.0
        %1766 = vmatprep.subr.mxu0 0.0
        %1767 = vmatpush1.msra.mxu0 0.0
        %1768 = vmatprep.subr.mxu0 0.0
        %1769 = vmatpush1.msra.mxu0 0.0
        %1770 = vmatprep.subr.mxu0 0.0
        %1771 = vmatpush1.msra.mxu0 0.0
        %1772 = vmatprep.subr.mxu0 0.0
        %1773 = vmatpush1.msra.mxu0 0.0
        %1774 = vmatprep.subr.mxu0 0.0
        %1775 = vmatpush1.msra.mxu0 0.0
        %1776 = vmatprep.subr.mxu0 0.0
        %1777 = vmatpush1.msra.mxu0 0.0
        %1778 = vmatprep.subr.mxu0 0.0
        %1779 = vmatpush1.msra.mxu0 0.0
        %1780 = vmatprep.subr.mxu0 0.0
        %1781 = vmatpush1.msra.mxu0 0.0
        %1782 = vmatprep.subr.mxu0 0.0
        %1783 = vmatpush1.msra.mxu0 0.0
        %1784 = vmatprep.subr.mxu0 0.0
        %1785 = vmatpush1.msra.mxu0 0.0
        %1786 = vmatprep.subr.mxu0 0.0
        %1787 = vmatpush1.msra.mxu0 0.0
        %1788 = vmatprep.subr.mxu0 0.0
        %1789 = vmatpush1.msra.mxu0 0.0
        %1790 = vmatprep.mubr.f32.mxu0 0.0
        %1791 = vmatmul.mubr.f32.gmra.mrb[0].mxu0 %v1577
        %v1792 = vpop.f32.mrb[0].mxu0
        %v1793 = vadd.f32 %v1723, %v1792
        %v1794 = vpop.f32.mrb[0].mxu0
        %1795 = vdwg.mxu0
        %v1796 = vadd.f32 %v1793, %v509
        %v1797 = vmul.f32 %v523, %v1577
        %v1798 = vmul.f32 %v530, %v1796
        %v1799 = vadd.f32 %v1797, %v1798
        %v1800 = vtanh.pop %v1799
        %1801 = vmatprep.subr.mxu0 0.0
        %1802 = vmatpush1.msra.mxu0 %v488
        %1803 = vmatprep.subr.mxu0 0.0
        %1804 = vmatpush1.msra.mxu0 %v489
        %1805 = vmatprep.subr.mxu0 0.0
        %1806 = vmatpush1.msra.mxu0 %v490
        %1807 = vmatprep.subr.mxu0 0.0
        %1808 = vmatpush1.msra.mxu0 %v491
        %1809 = vmatprep.subr.mxu0 0.0
        %1810 = vmatpush1.msra.mxu0 %v492
        %1811 = vmatprep.subr.mxu0 0.0
        %1812 = vmatpush1.msra.mxu0 %v493
        %1813 = vmatprep.subr.mxu0 0.0
        %1814 = vmatpush1.msra.mxu0 %v494
        %1815 = vmatprep.subr.mxu0 0.0
        %1816 = vmatpush1.msra.mxu0 %v495
        %1817 = vmatprep.subr.mxu0 0.0
        %1818 = vmatpush1.msra.mxu0 %v496
        %1819 = vmatprep.subr.mxu0 0.0
        %1820 = vmatpush1.msra.mxu0 %v497
        %1821 = vmatprep.subr.mxu0 0.0
        %1822 = vmatpush1.msra.mxu0 %v498
        %1823 = vmatprep.subr.mxu0 0.0
        %1824 = vmatpush1.msra.mxu0 %v499
        %1825 = vmatprep.subr.mxu0 0.0
        %1826 = vmatpush1.msra.mxu0 %v500
        %1827 = vmatprep.subr.mxu0 0.0
        %1828 = vmatpush1.msra.mxu0 %v501
        %1829 = vmatprep.subr.mxu0 0.0
        %1830 = vmatpush1.msra.mxu0 %v502
        %1831 = vmatprep.subr.mxu0 0.0
        %1832 = vmatpush1.msra.mxu0 %v503
        %1833 = vmatprep.subr.mxu0 0.0
        %1834 = vmatpush1.msra.mxu0 0.0
        %1835 = vmatprep.subr.mxu0 0.0
        %1836 = vmatpush1.msra.mxu0 0.0
        %1837 = vmatprep.subr.mxu0 0.0
        %1838 = vmatpush1.msra.mxu0 0.0
        %1839 = vmatprep.subr.mxu0 0.0
        %1840 = vmatpush1.msra.mxu0 0.0
        %1841 = vmatprep.subr.mxu0 0.0
        %1842 = vmatpush1.msra.mxu0 0.0
        %1843 = vmatprep.subr.mxu0 0.0
        %1844 = vmatpush1.msra.mxu0 0.0
        %1845 = vmatprep.subr.mxu0 0.0
        %1846 = vmatpush1.msra.mxu0 0.0
        %1847 = vmatprep.subr.mxu0 0.0
        %1848 = vmatpush1.msra.mxu0 0.0
        %1849 = vmatprep.subr.mxu0 0.0
        %1850 = vmatpush1.msra.mxu0 0.0
        %1851 = vmatprep.subr.mxu0 0.0
        %1852 = vmatpush1.msra.mxu0 0.0
        %1853 = vmatprep.subr.mxu0 0.0
        %1854 = vmatpush1.msra.mxu0 0.0
        %1855 = vmatprep.subr.mxu0 0.0
        %1856 = vmatpush1.msra.mxu0 0.0
        %1857 = vmatprep.subr.mxu0 0.0
        %1858 = vmatpush1.msra.mxu0 0.0
        %1859 = vmatprep.subr.mxu0 0.0
        %1860 = vmatpush1.msra.mxu0 0.0
        %1861 = vmatprep.subr.mxu0 0.0
        %1862 = vmatpush1.msra.mxu0 0.0
        %1863 = vmatprep.subr.mxu0 0.0
        %1864 = vmatpush1.msra.mxu0 0.0
        %1865 = vmatprep.mubr.f32.mxu0 0.0
        %1866 = vmatmul.mubr.f32.gmra.mrb[0].mxu0 %v1800
        %v1867 = vpop.f32.mrb[0].mxu0
        %v1868 = vadd.f32 %v516, %v1867
        %v1869 = vpop.f32.mrb[0].mxu0
        %1870 = vdwg.mxu0
        %v1871 = vtanh.pop %v1868
        %s1872 = scalar_lea.vmem %s451, 40 [#allocation3]
        %1873 = vst.msk [vmem:[%s1872] sm:$0xff] %vm534, %v1871
        %s1874 = scalar_lea.vmem %s416, 48 [#allocation2]
        %v1875 = vld [vmem:[%s1874] sm:$0xff]
        %v1877 = vsel %vm534, %v1875, 0
        %1879 = vmatprep.subr.mxu0 0.0
        %1880 = vmatpush1.msra.mxu0 %v540
        %1881 = vmatprep.subr.mxu0 0.0
        %1882 = vmatpush1.msra.mxu0 0.0
        %1883 = vmatprep.subr.mxu0 0.0
        %1884 = vmatpush1.msra.mxu0 0.0
        %1885 = vmatprep.subr.mxu0 0.0
        %1886 = vmatpush1.msra.mxu0 0.0
        %1887 = vmatprep.subr.mxu0 0.0
        %1888 = vmatpush1.msra.mxu0 0.0
        %1889 = vmatprep.subr.mxu0 0.0
        %1890 = vmatpush1.msra.mxu0 0.0
        %1891 = vmatprep.subr.mxu0 0.0
        %1892 = vmatpush1.msra.mxu0 0.0
        %1893 = vmatprep.subr.mxu0 0.0
        %1894 = vmatpush1.msra.mxu0 0.0
        %1895 = vmatprep.subr.mxu0 0.0
        %1896 = vmatpush1.msra.mxu0 0.0
        %1897 = vmatprep.subr.mxu0 0.0
        %1898 = vmatpush1.msra.mxu0 0.0
        %1899 = vmatprep.subr.mxu0 0.0
        %1900 = vmatpush1.msra.mxu0 0.0
        %1901 = vmatprep.subr.mxu0 0.0
        %1902 = vmatpush1.msra.mxu0 0.0
        %1903 = vmatprep.subr.mxu0 0.0
        %1904 = vmatpush1.msra.mxu0 0.0
        %1905 = vmatprep.subr.mxu0 0.0
        %1906 = vmatpush1.msra.mxu0 0.0
        %1907 = vmatprep.subr.mxu0 0.0
        %1908 = vmatpush1.msra.mxu0 0.0
        %1909 = vmatprep.subr.mxu0 0.0
        %1910 = vmatpush1.msra.mxu0 0.0
        %1911 = vmatprep.subr.mxu0 0.0
        %1912 = vmatpush1.msra.mxu0 0.0
        %1913 = vmatprep.subr.mxu0 0.0
        %1914 = vmatpush1.msra.mxu0 0.0
        %1915 = vmatprep.subr.mxu0 0.0
        %1916 = vmatpush1.msra.mxu0 0.0
        %1917 = vmatprep.subr.mxu0 0.0
        %1918 = vmatpush1.msra.mxu0 0.0
        %1919 = vmatprep.subr.mxu0 0.0
        %1920 = vmatpush1.msra.mxu0 0.0
        %1921 = vmatprep.subr.mxu0 0.0
        %1922 = vmatpush1.msra.mxu0 0.0
        %1923 = vmatprep.subr.mxu0 0.0
        %1924 = vmatpush1.msra.mxu0 0.0
        %1925 = vmatprep.subr.mxu0 0.0
        %1926 = vmatpush1.msra.mxu0 0.0
        %1927 = vmatprep.subr.mxu0 0.0
        %1928 = vmatpush1.msra.mxu0 0.0
        %1929 = vmatprep.subr.mxu0 0.0
        %1930 = vmatpush1.msra.mxu0 0.0
        %1931 = vmatprep.subr.mxu0 0.0
        %1932 = vmatpush1.msra.mxu0 0.0
        %1933 = vmatprep.subr.mxu0 0.0
        %1934 = vmatpush1.msra.mxu0 0.0
        %1935 = vmatprep.subr.mxu0 0.0
        %1936 = vmatpush1.msra.mxu0 0.0
        %1937 = vmatprep.subr.mxu0 0.0
        %1938 = vmatpush1.msra.mxu0 0.0
        %1939 = vmatprep.subr.mxu0 0.0
        %1940 = vmatpush1.msra.mxu0 0.0
        %1941 = vmatprep.subr.mxu0 0.0
        %1942 = vmatpush1.msra.mxu0 0.0
        %1943 = vmatprep.mubr.f32.mxu0 0.0
        %1944 = vmatmul.mubr.f32.gmra.mrb[0].mxu0 %v1877
        %v1945 = vpop.f32.mrb[0].mxu0
        %v1946 = vadd.f32 0.0, %v1945
        %v1947 = vpop.f32.mrb[0].mxu0
        %1948 = vdwg.mxu0
        %1949 = vmatprep.subr.mxu0 0.0
        %1950 = vmatpush1.msra.mxu0 %v471
        %1951 = vmatprep.subr.mxu0 0.0
        %1952 = vmatpush1.msra.mxu0 %v472
        %1953 = vmatprep.subr.mxu0 0.0
        %1954 = vmatpush1.msra.mxu0 %v473
        %1955 = vmatprep.subr.mxu0 0.0
        %1956 = vmatpush1.msra.mxu0 %v474
        %1957 = vmatprep.subr.mxu0 0.0
        %1958 = vmatpush1.msra.mxu0 %v475
        %1959 = vmatprep.subr.mxu0 0.0
        %1960 = vmatpush1.msra.mxu0 %v476
        %1961 = vmatprep.subr.mxu0 0.0
        %1962 = vmatpush1.msra.mxu0 %v477
        %1963 = vmatprep.subr.mxu0 0.0
        %1964 = vmatpush1.msra.mxu0 %v478
        %1965 = vmatprep.subr.mxu0 0.0
        %1966 = vmatpush1.msra.mxu0 %v479
        %1967 = vmatprep.subr.mxu0 0.0
        %1968 = vmatpush1.msra.mxu0 %v480
        %1969 = vmatprep.subr.mxu0 0.0
        %1970 = vmatpush1.msra.mxu0 %v481
        %1971 = vmatprep.subr.mxu0 0.0
        %1972 = vmatpush1.msra.mxu0 %v482
        %1973 = vmatprep.subr.mxu0 0.0
        %1974 = vmatpush1.msra.mxu0 %v483
        %1975 = vmatprep.subr.mxu0 0.0
        %1976 = vmatpush1.msra.mxu0 %v484
        %1977 = vmatprep.subr.mxu0 0.0
        %1978 = vmatpush1.msra.mxu0 %v485
        %1979 = vmatprep.subr.mxu0 0.0
        %1980 = vmatpush1.msra.mxu0 %v486
        %1981 = vmatprep.subr.mxu0 0.0
        %1982 = vmatpush1.msra.mxu0 0.0
        %1983 = vmatprep.subr.mxu0 0.0
        %1984 = vmatpush1.msra.mxu0 0.0
        %1985 = vmatprep.subr.mxu0 0.0
        %1986 = vmatpush1.msra.mxu0 0.0
        %1987 = vmatprep.subr.mxu0 0.0
        %1988 = vmatpush1.msra.mxu0 0.0
        %1989 = vmatprep.subr.mxu0 0.0
        %1990 = vmatpush1.msra.mxu0 0.0
        %1991 = vmatprep.subr.mxu0 0.0
        %1992 = vmatpush1.msra.mxu0 0.0
        %1993 = vmatprep.subr.mxu0 0.0
        %1994 = vmatpush1.msra.mxu0 0.0
        %1995 = vmatprep.subr.mxu0 0.0
        %1996 = vmatpush1.msra.mxu0 0.0
        %1997 = vmatprep.subr.mxu0 0.0
        %1998 = vmatpush1.msra.mxu0 0.0
        %1999 = vmatprep.subr.mxu0 0.0
        %2000 = vmatpush1.msra.mxu0 0.0
        %2001 = vmatprep.subr.mxu0 0.0
        %2002 = vmatpush1.msra.mxu0 0.0
        %2003 = vmatprep.subr.mxu0 0.0
        %2004 = vmatpush1.msra.mxu0 0.0
        %2005 = vmatprep.subr.mxu0 0.0
        %2006 = vmatpush1.msra.mxu0 0.0
        %2007 = vmatprep.subr.mxu0 0.0
        %2008 = vmatpush1.msra.mxu0 0.0
        %2009 = vmatprep.subr.mxu0 0.0
        %2010 = vmatpush1.msra.mxu0 0.0
        %2011 = vmatprep.subr.mxu0 0.0
        %2012 = vmatpush1.msra.mxu0 0.0
        %2013 = vmatprep.mubr.f32.mxu0 0.0
        %2014 = vmatmul.mubr.f32.gmra.mrb[0].mxu0 %v1800
        %v2015 = vpop.f32.mrb[0].mxu0
        %v2016 = vadd.f32 %v1946, %v2015
        %v2017 = vpop.f32.mrb[0].mxu0
        %2018 = vdwg.mxu0
        %v2019 = vadd.f32 %v2016, %v509
        %v2020 = vmul.f32 %v523, %v1800
        %v2021 = vmul.f32 %v530, %v2019
        %v2022 = vadd.f32 %v2020, %v2021
        %v2023 = vtanh.pop %v2022
        %2024 = vmatprep.subr.mxu0 0.0
        %2025 = vmatpush1.msra.mxu0 %v488
        %2026 = vmatprep.subr.mxu0 0.0
        %2027 = vmatpush1.msra.mxu0 %v489
        %2028 = vmatprep.subr.mxu0 0.0
        %2029 = vmatpush1.msra.mxu0 %v490
        %2030 = vmatprep.subr.mxu0 0.0
        %2031 = vmatpush1.msra.mxu0 %v491
        %2032 = vmatprep.subr.mxu0 0.0
        %2033 = vmatpush1.msra.mxu0 %v492
        %2034 = vmatprep.subr.mxu0 0.0
        %2035 = vmatpush1.msra.mxu0 %v493
        %2036 = vmatprep.subr.mxu0 0.0
        %2037 = vmatpush1.msra.mxu0 %v494
        %2038 = vmatprep.subr.mxu0 0.0
        %2039 = vmatpush1.msra.mxu0 %v495
        %2040 = vmatprep.subr.mxu0 0.0
        %2041 = vmatpush1.msra.mxu0 %v496
        %2042 = vmatprep.subr.mxu0 0.0
        %2043 = vmatpush1.msra.mxu0 %v497
        %2044 = vmatprep.subr.mxu0 0.0
        %2045 = vmatpush1.msra.mxu0 %v498
        %2046 = vmatprep.subr.mxu0 0.0
        %2047 = vmatpush1.msra.mxu0 %v499
        %2048 = vmatprep.subr.mxu0 0.0
        %2049 = vmatpush1.msra.mxu0 %v500
        %2050 = vmatprep.subr.mxu0 0.0
        %2051 = vmatpush1.msra.mxu0 %v501
        %2052 = vmatprep.subr.mxu0 0.0
        %2053 = vmatpush1.msra.mxu0 %v502
        %2054 = vmatprep.subr.mxu0 0.0
        %2055 = vmatpush1.msra.mxu0 %v503
        %2056 = vmatprep.subr.mxu0 0.0
        %2057 = vmatpush1.msra.mxu0 0.0
        %2058 = vmatprep.subr.mxu0 0.0
        %2059 = vmatpush1.msra.mxu0 0.0
        %2060 = vmatprep.subr.mxu0 0.0
        %2061 = vmatpush1.msra.mxu0 0.0
        %2062 = vmatprep.subr.mxu0 0.0
        %2063 = vmatpush1.msra.mxu0 0.0
        %2064 = vmatprep.subr.mxu0 0.0
        %2065 = vmatpush1.msra.mxu0 0.0
        %2066 = vmatprep.subr.mxu0 0.0
        %2067 = vmatpush1.msra.mxu0 0.0
        %2068 = vmatprep.subr.mxu0 0.0
        %2069 = vmatpush1.msra.mxu0 0.0
        %2070 = vmatprep.subr.mxu0 0.0
        %2071 = vmatpush1.msra.mxu0 0.0
        %2072 = vmatprep.subr.mxu0 0.0
        %2073 = vmatpush1.msra.mxu0 0.0
        %2074 = vmatprep.subr.mxu0 0.0
        %2075 = vmatpush1.msra.mxu0 0.0
        %2076 = vmatprep.subr.mxu0 0.0
        %2077 = vmatpush1.msra.mxu0 0.0
        %2078 = vmatprep.subr.mxu0 0.0
        %2079 = vmatpush1.msra.mxu0 0.0
        %2080 = vmatprep.subr.mxu0 0.0
        %2081 = vmatpush1.msra.mxu0 0.0
        %2082 = vmatprep.subr.mxu0 0.0
        %2083 = vmatpush1.msra.mxu0 0.0
        %2084 = vmatprep.subr.mxu0 0.0
        %2085 = vmatpush1.msra.mxu0 0.0
        %2086 = vmatprep.subr.mxu0 0.0
        %2087 = vmatpush1.msra.mxu0 0.0
        %2088 = vmatprep.mubr.f32.mxu0 0.0
        %2089 = vmatmul.mubr.f32.gmra.mrb[0].mxu0 %v2023
        %v2090 = vpop.f32.mrb[0].mxu0
        %v2091 = vadd.f32 %v516, %v2090
        %v2092 = vpop.f32.mrb[0].mxu0
        %2093 = vdwg.mxu0
        %v2094 = vtanh.pop %v2091
        %s2095 = scalar_lea.vmem %s451, 48 [#allocation3]
        %2096 = vst.msk [vmem:[%s2095] sm:$0xff] %vm534, %v2094
        %s2097 = scalar_lea.vmem %s416, 56 [#allocation2]
        %v2098 = vld [vmem:[%s2097] sm:$0xff]
        %v2100 = vsel %vm534, %v2098, 0
        %2102 = vmatprep.subr.mxu0 0.0
        %2103 = vmatpush1.msra.mxu0 %v540
        %2104 = vmatprep.subr.mxu0 0.0
        %2105 = vmatpush1.msra.mxu0 0.0
        %2106 = vmatprep.subr.mxu0 0.0
        %2107 = vmatpush1.msra.mxu0 0.0
        %2108 = vmatprep.subr.mxu0 0.0
        %2109 = vmatpush1.msra.mxu0 0.0
        %2110 = vmatprep.subr.mxu0 0.0
        %2111 = vmatpush1.msra.mxu0 0.0
        %2112 = vmatprep.subr.mxu0 0.0
        %2113 = vmatpush1.msra.mxu0 0.0
        %2114 = vmatprep.subr.mxu0 0.0
        %2115 = vmatpush1.msra.mxu0 0.0
        %2116 = vmatprep.subr.mxu0 0.0
        %2117 = vmatpush1.msra.mxu0 0.0
        %2118 = vmatprep.subr.mxu0 0.0
        %2119 = vmatpush1.msra.mxu0 0.0
        %2120 = vmatprep.subr.mxu0 0.0
        %2121 = vmatpush1.msra.mxu0 0.0
        %2122 = vmatprep.subr.mxu0 0.0
        %2123 = vmatpush1.msra.mxu0 0.0
        %2124 = vmatprep.subr.mxu0 0.0
        %2125 = vmatpush1.msra.mxu0 0.0
        %2126 = vmatprep.subr.mxu0 0.0
        %2127 = vmatpush1.msra.mxu0 0.0
        %2128 = vmatprep.subr.mxu0 0.0
        %2129 = vmatpush1.msra.mxu0 0.0
        %2130 = vmatprep.subr.mxu0 0.0
        %2131 = vmatpush1.msra.mxu0 0.0
        %2132 = vmatprep.subr.mxu0 0.0
        %2133 = vmatpush1.msra.mxu0 0.0
        %2134 = vmatprep.subr.mxu0 0.0
        %2135 = vmatpush1.msra.mxu0 0.0
        %2136 = vmatprep.subr.mxu0 0.0
        %2137 = vmatpush1.msra.mxu0 0.0
        %2138 = vmatprep.subr.mxu0 0.0
        %2139 = vmatpush1.msra.mxu0 0.0
        %2140 = vmatprep.subr.mxu0 0.0
        %2141 = vmatpush1.msra.mxu0 0.0
        %2142 = vmatprep.subr.mxu0 0.0
        %2143 = vmatpush1.msra.mxu0 0.0
        %2144 = vmatprep.subr.mxu0 0.0
        %2145 = vmatpush1.msra.mxu0 0.0
        %2146 = vmatprep.subr.mxu0 0.0
        %2147 = vmatpush1.msra.mxu0 0.0
        %2148 = vmatprep.subr.mxu0 0.0
        %2149 = vmatpush1.msra.mxu0 0.0
        %2150 = vmatprep.subr.mxu0 0.0
        %2151 = vmatpush1.msra.mxu0 0.0
        %2152 = vmatprep.subr.mxu0 0.0
        %2153 = vmatpush1.msra.mxu0 0.0
        %2154 = vmatprep.subr.mxu0 0.0
        %2155 = vmatpush1.msra.mxu0 0.0
        %2156 = vmatprep.subr.mxu0 0.0
        %2157 = vmatpush1.msra.mxu0 0.0
        %2158 = vmatprep.subr.mxu0 0.0
        %2159 = vmatpush1.msra.mxu0 0.0
        %2160 = vmatprep.subr.mxu0 0.0
        %2161 = vmatpush1.msra.mxu0 0.0
        %2162 = vmatprep.subr.mxu0 0.0
        %2163 = vmatpush1.msra.mxu0 0.0
        %2164 = vmatprep.subr.mxu0 0.0
        %2165 = vmatpush1.msra.mxu0 0.0
        %2166 = vmatprep.mubr.f32.mxu0 0.0
        %2167 = vmatmul.mubr.f32.gmra.mrb[0].mxu0 %v2100
        %v2168 = vpop.f32.mrb[0].mxu0
        %v2169 = vadd.f32 0.0, %v2168
        %v2170 = vpop.f32.mrb[0].mxu0
        %2171 = vdwg.mxu0
        %2172 = vmatprep.subr.mxu0 0.0
        %2173 = vmatpush1.msra.mxu0 %v471
        %2174 = vmatprep.subr.mxu0 0.0
        %2175 = vmatpush1.msra.mxu0 %v472
        %2176 = vmatprep.subr.mxu0 0.0
        %2177 = vmatpush1.msra.mxu0 %v473
        %2178 = vmatprep.subr.mxu0 0.0
        %2179 = vmatpush1.msra.mxu0 %v474
        %2180 = vmatprep.subr.mxu0 0.0
        %2181 = vmatpush1.msra.mxu0 %v475
        %2182 = vmatprep.subr.mxu0 0.0
        %2183 = vmatpush1.msra.mxu0 %v476
        %2184 = vmatprep.subr.mxu0 0.0
        %2185 = vmatpush1.msra.mxu0 %v477
        %2186 = vmatprep.subr.mxu0 0.0
        %2187 = vmatpush1.msra.mxu0 %v478
        %2188 = vmatprep.subr.mxu0 0.0
        %2189 = vmatpush1.msra.mxu0 %v479
        %2190 = vmatprep.subr.mxu0 0.0
        %2191 = vmatpush1.msra.mxu0 %v480
        %2192 = vmatprep.subr.mxu0 0.0
        %2193 = vmatpush1.msra.mxu0 %v481
        %2194 = vmatprep.subr.mxu0 0.0
        %2195 = vmatpush1.msra.mxu0 %v482
        %2196 = vmatprep.subr.mxu0 0.0
        %2197 = vmatpush1.msra.mxu0 %v483
        %2198 = vmatprep.subr.mxu0 0.0
        %2199 = vmatpush1.msra.mxu0 %v484
        %2200 = vmatprep.subr.mxu0 0.0
        %2201 = vmatpush1.msra.mxu0 %v485
        %2202 = vmatprep.subr.mxu0 0.0
        %2203 = vmatpush1.msra.mxu0 %v486
        %2204 = vmatprep.subr.mxu0 0.0
        %2205 = vmatpush1.msra.mxu0 0.0
        %2206 = vmatprep.subr.mxu0 0.0
        %2207 = vmatpush1.msra.mxu0 0.0
        %2208 = vmatprep.subr.mxu0 0.0
        %2209 = vmatpush1.msra.mxu0 0.0
        %2210 = vmatprep.subr.mxu0 0.0
        %2211 = vmatpush1.msra.mxu0 0.0
        %2212 = vmatprep.subr.mxu0 0.0
        %2213 = vmatpush1.msra.mxu0 0.0
        %2214 = vmatprep.subr.mxu0 0.0
        %2215 = vmatpush1.msra.mxu0 0.0
        %2216 = vmatprep.subr.mxu0 0.0
        %2217 = vmatpush1.msra.mxu0 0.0
        %2218 = vmatprep.subr.mxu0 0.0
        %2219 = vmatpush1.msra.mxu0 0.0
        %2220 = vmatprep.subr.mxu0 0.0
        %2221 = vmatpush1.msra.mxu0 0.0
        %2222 = vmatprep.subr.mxu0 0.0
        %2223 = vmatpush1.msra.mxu0 0.0
        %2224 = vmatprep.subr.mxu0 0.0
        %2225 = vmatpush1.msra.mxu0 0.0
        %2226 = vmatprep.subr.mxu0 0.0
        %2227 = vmatpush1.msra.mxu0 0.0
        %2228 = vmatprep.subr.mxu0 0.0
        %2229 = vmatpush1.msra.mxu0 0.0
        %2230 = vmatprep.subr.mxu0 0.0
        %2231 = vmatpush1.msra.mxu0 0.0
        %2232 = vmatprep.subr.mxu0 0.0
        %2233 = vmatpush1.msra.mxu0 0.0
        %2234 = vmatprep.subr.mxu0 0.0
        %2235 = vmatpush1.msra.mxu0 0.0
        %2236 = vmatprep.mubr.f32.mxu0 0.0
        %2237 = vmatmul.mubr.f32.gmra.mrb[0].mxu0 %v2023
        %v2238 = vpop.f32.mrb[0].mxu0
        %v2239 = vadd.f32 %v2169, %v2238
        %v2240 = vpop.f32.mrb[0].mxu0
        %2241 = vdwg.mxu0
        %v2242 = vadd.f32 %v2239, %v509
        %v2243 = vmul.f32 %v523, %v2023
        %v2244 = vmul.f32 %v530, %v2242
        %v2245 = vadd.f32 %v2243, %v2244
        %v2246 = vtanh.pop %v2245
        %2247 = vmatprep.subr.mxu0 0.0
        %2248 = vmatpush1.msra.mxu0 %v488
        %2249 = vmatprep.subr.mxu0 0.0
        %2250 = vmatpush1.msra.mxu0 %v489
        %2251 = vmatprep.subr.mxu0 0.0
        %2252 = vmatpush1.msra.mxu0 %v490
        %2253 = vmatprep.subr.mxu0 0.0
        %2254 = vmatpush1.msra.mxu0 %v491
        %2255 = vmatprep.subr.mxu0 0.0
        %2256 = vmatpush1.msra.mxu0 %v492
        %2257 = vmatprep.subr.mxu0 0.0
        %2258 = vmatpush1.msra.mxu0 %v493
        %2259 = vmatprep.subr.mxu0 0.0
        %2260 = vmatpush1.msra.mxu0 %v494
        %2261 = vmatprep.subr.mxu0 0.0
        %2262 = vmatpush1.msra.mxu0 %v495
        %2263 = vmatprep.subr.mxu0 0.0
        %2264 = vmatpush1.msra.mxu0 %v496
        %2265 = vmatprep.subr.mxu0 0.0
        %2266 = vmatpush1.msra.mxu0 %v497
        %2267 = vmatprep.subr.mxu0 0.0
        %2268 = vmatpush1.msra.mxu0 %v498
        %2269 = vmatprep.subr.mxu0 0.0
        %2270 = vmatpush1.msra.mxu0 %v499
        %2271 = vmatprep.subr.mxu0 0.0
        %2272 = vmatpush1.msra.mxu0 %v500
        %2273 = vmatprep.subr.mxu0 0.0
        %2274 = vmatpush1.msra.mxu0 %v501
        %2275 = vmatprep.subr.mxu0 0.0
        %2276 = vmatpush1.msra.mxu0 %v502
        %2277 = vmatprep.subr.mxu0 0.0
        %2278 = vmatpush1.msra.mxu0 %v503
        %2279 = vmatprep.subr.mxu0 0.0
        %2280 = vmatpush1.msra.mxu0 0.0
        %2281 = vmatprep.subr.mxu0 0.0
        %2282 = vmatpush1.msra.mxu0 0.0
        %2283 = vmatprep.subr.mxu0 0.0
        %2284 = vmatpush1.msra.mxu0 0.0
        %2285 = vmatprep.subr.mxu0 0.0
        %2286 = vmatpush1.msra.mxu0 0.0
        %2287 = vmatprep.subr.mxu0 0.0
        %2288 = vmatpush1.msra.mxu0 0.0
        %2289 = vmatprep.subr.mxu0 0.0
        %2290 = vmatpush1.msra.mxu0 0.0
        %2291 = vmatprep.subr.mxu0 0.0
        %2292 = vmatpush1.msra.mxu0 0.0
        %2293 = vmatprep.subr.mxu0 0.0
        %2294 = vmatpush1.msra.mxu0 0.0
        %2295 = vmatprep.subr.mxu0 0.0
        %2296 = vmatpush1.msra.mxu0 0.0
        %2297 = vmatprep.subr.mxu0 0.0
        %2298 = vmatpush1.msra.mxu0 0.0
        %2299 = vmatprep.subr.mxu0 0.0
        %2300 = vmatpush1.msra.mxu0 0.0
        %2301 = vmatprep.subr.mxu0 0.0
        %2302 = vmatpush1.msra.mxu0 0.0
        %2303 = vmatprep.subr.mxu0 0.0
        %2304 = vmatpush1.msra.mxu0 0.0
        %2305 = vmatprep.subr.mxu0 0.0
        %2306 = vmatpush1.msra.mxu0 0.0
        %2307 = vmatprep.subr.mxu0 0.0
        %2308 = vmatpush1.msra.mxu0 0.0
        %2309 = vmatprep.subr.mxu0 0.0
        %2310 = vmatpush1.msra.mxu0 0.0
        %2311 = vmatprep.mubr.f32.mxu0 0.0
        %2312 = vmatmul.mubr.f32.gmra.mrb[0].mxu0 %v2246
        %v2313 = vpop.f32.mrb[0].mxu0
        %v2314 = vadd.f32 %v516, %v2313
        %v2315 = vpop.f32.mrb[0].mxu0
        %2316 = vdwg.mxu0
        %v2317 = vtanh.pop %v2314
        %s2318 = scalar_lea.vmem %s451, 56 [#allocation3]
        %2319 = vst.msk [vmem:[%s2318] sm:$0xff] %vm534, %v2317
        %2320 = vst [vmem:[%s458] sm:$0xff] %v2246
        %s2321 = sand.u32 %s248, 1
        %s2322 = sand.u32 %s248, 1
        %s2323 = smul.addr %s2322, 64
        %s2324 = scalar_lea.vmem [#allocation3], %s2323
        %s2325 = sand.u32 %s274, 1
        %s2326 = scalar_lea.sflag [#allocation5], %s2325
        %s2327 = sand.u32 %s274, 1
        %s2328 = smul.addr %s2327, 8
        %s2329 = scalar_lea.vmem [#allocation4], %s2328
        // Predicated region
        $region99: #{tpu_custom_call.1} parent=89 // pred_check
          %p2330 = pneg %p258
        $region100: #{tpu_custom_call.1} parent=89 // pred_check_branch
          %2332 = sbr.rel (%p2330) target = $region102
        $region101: #{tpu_custom_call.1} parent=89 // pred_region
          %s2333 = smul.u32 8, %s30
          %s2334 = smul.addr %s2333, 2
          %s2335 = sadd.s32 %s29, %s2334
          %s2336 = smul.addr %s2335, 8
          %s2337 = scalar_lea.vmem %s9, %s2336
          // Predicated region
          $region103: #{tpu_custom_call.1} parent=101 // pred_check
            _
          $region104: #{tpu_custom_call.1} parent=101 // pred_check_branch
            %2339 = sbr.rel (0) target = $region106
          $region105: #{tpu_custom_call.1} parent=101 // pred_region
            // Predicated region
            $region107: #{tpu_custom_call.1} parent=105 // pred_check
              _
            $region108: #{tpu_custom_call.1} parent=105 // pred_check_branch
              %2341 = sbr.rel (0) target = $region110
            $region109: #{tpu_custom_call.1} parent=105 // pred_region
              // Predicated region
              $region122: #{tpu_custom_call.1} parent=109 // pred_check
                _
              $region123: #{tpu_custom_call.1} parent=109 // pred_check_branch
                %2370 = sbr.rel (0) target = $region125
              $region124: #{tpu_custom_call.1} parent=109 // pred_region
                loop: start=0, step=1, limit=1
                $region126: #{tpu_custom_call.1} parent=124 // loop_pre_header
                  _
                $region127: #{tpu_custom_call.1} parent=124 // loop_header
                  %s2372 = sphi 0, %s2376
                  %p2373 = scmp.ge.s32.totalorder %s2372, 1
                  %s2377 = sphi %s2324, %s2324
                  %s2378 = sphi %s2337, %s2337
                $region128: #{tpu_custom_call.1} parent=124 // loop_header_branch
                  %2375 = sbr.rel (%p2373) target = $region132
                $region129: #{tpu_custom_call.1} parent=124 // loop_body
                  %v2379 = vld [vmem:[%s2377] sm:$0xff]
                  %2380 = vst [vmem:[%s2378] sm:$0xff] %v2379
                  %v2381 = vld [vmem:[%s2377 + $0x8] sm:$0xff]
                  %2382 = vst [vmem:[%s2378 + $0x10] sm:$0xff] %v2381
                  %v2383 = vld [vmem:[%s2377 + $0x10] sm:$0xff]
                  %2384 = vst [vmem:[%s2378 + $0x20] sm:$0xff] %v2383
                  %v2385 = vld [vmem:[%s2377 + $0x18] sm:$0xff]
                  %2386 = vst [vmem:[%s2378 + $0x30] sm:$0xff] %v2385
                  %v2387 = vld [vmem:[%s2377 + $0x20] sm:$0xff]
                  %2388 = vst [vmem:[%s2378 + $0x40] sm:$0xff] %v2387
                  %v2389 = vld [vmem:[%s2377 + $0x28] sm:$0xff]
                  %2390 = vst [vmem:[%s2378 + $0x50] sm:$0xff] %v2389
                  %v2391 = vld [vmem:[%s2377 + $0x30] sm:$0xff]
                  %2392 = vst [vmem:[%s2378 + $0x60] sm:$0xff] %v2391
                  %v2393 = vld [vmem:[%s2377 + $0x38] sm:$0xff]
                  %2394 = vst [vmem:[%s2378 + $0x70] sm:$0xff] %v2393
                $region130: #{tpu_custom_call.1} parent=124 // loop_footer
                  %s2376 = sadd.s32 1, %s2372
                $region131: #{tpu_custom_call.1} parent=124 // loop_footer_branch
                  %2371 = sbr.rel target = $region127
                $region132: #{tpu_custom_call.1} parent=124 // loop_exit
                  _
              $region125: #{tpu_custom_call.1} parent=109 // pred_fallthru
                _
              // Predicated region
              $region133: #{tpu_custom_call.1} parent=109 // pred_check
                _
              $region134: #{tpu_custom_call.1} parent=109 // pred_check_branch
                %2396 = sbr.rel target = $region136
              $region135: #{tpu_custom_call.1} parent=109 // pred_region
                _
              $region136: #{tpu_custom_call.1} parent=109 // pred_fallthru
                _
            $region110: #{tpu_custom_call.1} parent=105 // pred_fallthru
              _
            // Predicated region
            $region111: #{tpu_custom_call.1} parent=105 // pred_check
              _
            $region112: #{tpu_custom_call.1} parent=105 // pred_check_branch
              %2343 = sbr.rel target = $region114
            $region113: #{tpu_custom_call.1} parent=105 // pred_region
              loop: start=0, step=1, limit=1
              $region115: #{tpu_custom_call.1} parent=113 // loop_pre_header
                _
              $region116: #{tpu_custom_call.1} parent=113 // loop_header
                %s2346 = sphi 0, %s2350
                %p2347 = scmp.ge.s32.totalorder %s2346, 1
                %s2351 = sphi %s2324, %s2324
                %s2352 = sphi %s2337, %s2337
              $region117: #{tpu_custom_call.1} parent=113 // loop_header_branch
                %2349 = sbr.rel (%p2347) target = $region121
              $region118: #{tpu_custom_call.1} parent=113 // loop_body
                %v2353 = vld [vmem:[%s2351] sm:$0xff]
                %2354 = vst [vmem:[%s2352] sm:$0xff] %v2353
                %v2355 = vld [vmem:[%s2351 + $0x8] sm:$0xff]
                %2356 = vst [vmem:[%s2352 + $0x10] sm:$0xff] %v2355
                %v2357 = vld [vmem:[%s2351 + $0x10] sm:$0xff]
                %2358 = vst [vmem:[%s2352 + $0x20] sm:$0xff] %v2357
                %v2359 = vld [vmem:[%s2351 + $0x18] sm:$0xff]
                %2360 = vst [vmem:[%s2352 + $0x30] sm:$0xff] %v2359
                %v2361 = vld [vmem:[%s2351 + $0x20] sm:$0xff]
                %2362 = vst [vmem:[%s2352 + $0x40] sm:$0xff] %v2361
                %v2363 = vld [vmem:[%s2351 + $0x28] sm:$0xff]
                %2364 = vst [vmem:[%s2352 + $0x50] sm:$0xff] %v2363
                %v2365 = vld [vmem:[%s2351 + $0x30] sm:$0xff]
                %2366 = vst [vmem:[%s2352 + $0x60] sm:$0xff] %v2365
                %v2367 = vld [vmem:[%s2351 + $0x38] sm:$0xff]
                %2368 = vst [vmem:[%s2352 + $0x70] sm:$0xff] %v2367
              $region119: #{tpu_custom_call.1} parent=113 // loop_footer
                %s2350 = sadd.s32 1, %s2346
              $region120: #{tpu_custom_call.1} parent=113 // loop_footer_branch
                %2345 = sbr.rel target = $region116
              $region121: #{tpu_custom_call.1} parent=113 // loop_exit
                _
            $region114: #{tpu_custom_call.1} parent=105 // pred_fallthru
              _
          $region106: #{tpu_custom_call.1} parent=101 // pred_fallthru
            _
          %2397 = vnop
        $region102: #{tpu_custom_call.1} parent=89 // pred_fallthru
          _
        // Predicated region
        $region137: #{tpu_custom_call.1} parent=89 // pred_check
          %p2398 = pneg %p284
        $region138: #{tpu_custom_call.1} parent=89 // pred_check_branch
          %2400 = sbr.rel (%p2398) target = $region140
        $region139: #{tpu_custom_call.1} parent=89 // pred_region
          %s2402 = ssub.s32 128, 128
          %2403 = vsyncadd %s2326, %s2402
          %s2404 = smul.addr %s29, 128
          %s2405 = scalar_lea.hbm %s10, %s2404
          %s2407 = sshll.u32 %s2329, 4
          %s2408 = int_to_ptr.vmem [resolvable:$true] %s2407
          %2410 = dma.vmem_to_hbm [thread:$0]  %s2408, 128, %s2405, %s2326
        $region140: #{tpu_custom_call.1} parent=89 // pred_fallthru
          _
      $region90: #{tpu_custom_call.1} parent=5 // pred_fallthru
        _
      %p2411 = scmp.le.s32.totalorder 2, %s20
      // Predicated region
      $region141: #{tpu_custom_call.1} parent=5 // pred_check
        %p2412 = pneg %p2411
      $region142: #{tpu_custom_call.1} parent=5 // pred_check_branch
        %2414 = sbr.rel (%p2412) target = $region144
      $region143: #{tpu_custom_call.1} parent=5 // pred_region
        %s2415 = ssub.s32 %s20, 2
        // Predicated region
        $region145: #{tpu_custom_call.1} parent=143 // pred_check
          %p2416 = pneg %p264
        $region146: #{tpu_custom_call.1} parent=143 // pred_check_branch
          %2418 = sbr.rel (%p2416) target = $region148
        $region147: #{tpu_custom_call.1} parent=143 // pred_region
          %s2419 = sand.u32 %s249, 1
          %s2420 = sand.u32 %s249, 1
          %s2421 = smul.addr %s2420, 64
          %s2422 = scalar_lea.vmem [#allocation3], %s2421
        $region148: #{tpu_custom_call.1} parent=143 // pred_fallthru
          _
        // Predicated region
        $region149: #{tpu_custom_call.1} parent=143 // pred_check
          %p2423 = pneg %p290
        $region150: #{tpu_custom_call.1} parent=143 // pred_check_branch
          %2425 = sbr.rel (%p2423) target = $region152
        $region151: #{tpu_custom_call.1} parent=143 // pred_region
          %s2426 = sand.u32 %s275, 1
          %s2427 = scalar_lea.sflag [#allocation5], %s2426
          %s2428 = sand.u32 %s275, 1
          %s2429 = smul.addr %s2428, 8
          %s2430 = scalar_lea.vmem [#allocation4], %s2429
          %2431 = dma.done %s2427, 128
        $region152: #{tpu_custom_call.1} parent=143 // pred_fallthru
          _
      $region144: #{tpu_custom_call.1} parent=5 // pred_fallthru
        _
    $region6: #{tpu_custom_call.1} parent=1 // loop_footer
      %s24 = sadd.s32 1, %s20
    $region7: #{tpu_custom_call.1} parent=1 // loop_footer_branch
      %19 = sbr.rel target = $region3
    $region8: #{tpu_custom_call.1} parent=1 // loop_exit
      _
    %2432 = vsyncpa [#allocation5], 1
    %s2433 = scalar_lea.sflag [#allocation5], 1
    %2434 = vsyncpa %s2433, 1

</llo_original>
